<compile_context>
chip_gen: v7x
topology: tpu7x:2x2x1
jax: 0.10.0
libtpu: 0.0.40
codegen_flags: <defaults>
</compile_context>

<pallas_src>
import jax
import jax.numpy as jnp
from jax.experimental import pallas as pl
from jax.experimental.pallas import tpu as pltpu

# ---- Module hyper-parameters (IMAGE_RESIZE / NUM_CLASSES chosen in-script) ----
IMAGE_RESIZE = (32, 32)          # -> input_size = 1024
NUM_CLASSES = 10
H1 = 512
H2 = 256
INPUT_SIZE = IMAGE_RESIZE[0] * IMAGE_RESIZE[1]
N_PAD = 128                      # fc3 output padded to a full 128-lane tile
TB_MAX = 1024                    # max batch-tile rows (fits comfortably in VMEM)


def _round_up(v, m):
    return (v + m - 1) // m * m


def mlp_kernel(x_ref, w1_ref, b1_ref, w2_ref, b2_ref, w3_ref, b3_ref, o_ref):
    """Fused MLP forward for one batch tile.

    x:  [TB, INPUT_SIZE]   f32 (cast to bf16 in-kernel)
    w1: [INPUT_SIZE, H1]   bf16,  b1: [1, H1]    f32
    w2: [H1, H2]           bf16,  b2: [1, H2]    f32
    w3: [H2, N_PAD]        bf16,  b3: [1, N_PAD] f32  (padded fc3)
    o:  [TB, N_PAD]        bf16
    """
    # In-kernel f32 -> bf16 cast (VPU work that hides under the MXU matmuls).
    x = x_ref[...].astype(jnp.bfloat16)
    # fc1 + ReLU (bf16 MXU matmul, f32 accumulate, f32 bias add)
    h1 = jnp.dot(x, w1_ref[...], preferred_element_type=jnp.float32) + b1_ref[...]
    h1 = jnp.maximum(h1, 0.0).astype(jnp.bfloat16)
    # fc2 + ReLU
    h2 = jnp.dot(h1, w2_ref[...], preferred_element_type=jnp.float32) + b2_ref[...]
    h2 = jnp.maximum(h2, 0.0).astype(jnp.bfloat16)
    # fc3 (padded logits, no activation)
    out = jnp.dot(h2, w3_ref[...], preferred_element_type=jnp.float32) + b3_ref[...]
    o_ref[...] = out.astype(o_ref.dtype)


def _choose_tiling(b):
    """Balanced batch tiling: >=2 (even) grid steps, rows a multiple of 16, tb <= TB_MAX."""
    n_tiles = max(2, pl.cdiv(b, TB_MAX))
    if n_tiles % 2:
        n_tiles += 1                      # even step count -> both v7x TCs stay busy
    tb = _round_up(pl.cdiv(b, n_tiles), 16)
    b_pad = tb * n_tiles
    return tb, n_tiles, b_pad


def simple_ann_forward(x_nchw, prepared_params):
    """JAX wrapper: flatten NCHW input, pick balanced batch tiles, run the fused MLP kernel."""
    w1, b1, w2, b2, w3p, b3p = prepared_params

    b = x_nchw.shape[0]
    x2d = x_nchw.reshape(b, -1)                       # x.view(x.size(0), -1)
    assert x2d.shape[1] == INPUT_SIZE, f"expected {INPUT_SIZE} features, got {x2d.shape[1]}"
    # NOTE: no standalone dtype cast here; the kernel casts f32 -> bf16 in VMEM.

    tb, n_tiles, b_pad = _choose_tiling(b)
    if b_pad != b:
        x2d = jnp.pad(x2d, ((0, b_pad - b), (0, 0)))
    grid = (n_tiles,)

    flops = 2 * b_pad * (INPUT_SIZE * H1 + H1 * H2 + H2 * N_PAD)
    bytes_accessed = (
        x2d.size * x2d.dtype.itemsize
        + (w1.size + w2.size + w3p.size) * 2
        + (b1.size + b2.size + b3p.size) * 4
        + b_pad * N_PAD * 2                           # bf16 logits
    )

    def _const_spec(shape):
        # Constant block index -> stays VMEM-resident; single buffer is enough.
        return pl.BlockSpec(shape, lambda i: (0, 0), pipeline_mode=pl.Buffered(1))

    out = pl.pallas_call(
        mlp_kernel,
        out_shape=jax.ShapeDtypeStruct((b_pad, N_PAD), jnp.bfloat16),
        grid_spec=pltpu.PrefetchScalarGridSpec(
            num_scalar_prefetch=0,
            grid=grid,
            in_specs=[
                # activations: tiled over the batch grid axis (double-buffered)
                pl.BlockSpec((tb, INPUT_SIZE), lambda i: (i, 0)),
                # weights/biases: DMA'd once, single-buffered
                _const_spec((INPUT_SIZE, H1)),
                _const_spec((1, H1)),
                _const_spec((H1, H2)),
                _const_spec((1, H2)),
                _const_spec((H2, N_PAD)),
                _const_spec((1, N_PAD)),
            ],
            out_specs=pl.BlockSpec((tb, N_PAD), lambda i: (i, 0)),
        ),
        compiler_params=pltpu.CompilerParams(
            dimension_semantics=("parallel",),        # megacore sharding on v7x
            vmem_limit_bytes=40 << 20,                # ~15-20 MiB footprint at tb=1024
        ),
        cost_estimate=pl.CostEstimate(
            flops=flops, transcendentals=0, bytes_accessed=bytes_accessed
        ),
    )(x2d, w1, b1, w2, b2, w3p, b3p)

    # drop batch padding and fc3 lane padding; upcast tiny logit slab to f32
    return out[:b, :NUM_CLASSES].astype(jnp.float32)


def init_params(key):
    """Deterministic f32 parameter init (matches nn.Linear shapes; uniform like PyTorch)."""
    ks = jax.random.split(key, 6)

    def linear(kw, kb, fan_in, fan_out):
        bound = 1.0 / jnp.sqrt(jnp.float32(fan_in))
        # stored transposed relative to PyTorch: (in, out) so kernel does x @ W
        w = jax.random.uniform(kw, (fan_in, fan_out), jnp.float32, -bound, bound)
        bias = jax.random.uniform(kb, (1, fan_out), jnp.float32, -bound, bound)
        return w, bias

    w1, b1 = linear(ks[0], ks[1], INPUT_SIZE, H1)
    w2, b2 = linear(ks[2], ks[3], H1, H2)
    w3, b3 = linear(ks[4], ks[5], H2, NUM_CLASSES)
    return (w1, b1, w2, b2, w3, b3)


def prepare_params(params):
    """Cast weights to bf16 (f32 accumulate happens on the MXU) and pad fc3 to 128 lanes."""
    w1, b1, w2, b2, w3, b3 = params
    w3p = jnp.pad(w3, ((0, 0), (0, N_PAD - NUM_CLASSES)))
    b3p = jnp.pad(b3, ((0, 0), (0, N_PAD - NUM_CLASSES)))
    return (
        w1.astype(jnp.bfloat16), b1.astype(jnp.float32),
        w2.astype(jnp.bfloat16), b2.astype(jnp.float32),
        w3p.astype(jnp.bfloat16), b3p.astype(jnp.float32),
    )


def reference_forward(x_nchw, params):
    """Pure-JAX reference mimicking the kernel's numerics (bf16 inputs/weights, f32 acc, bf16 logits)."""
    w1, b1, w2, b2, w3, b3 = params
    x = x_nchw.reshape(x_nchw.shape[0], -1).astype(jnp.bfloat16)
    h1 = jnp.dot(x, w1.astype(jnp.bfloat16), preferred_element_type=jnp.float32) + b1
    h1 = jnp.maximum(h1, 0.0).astype(jnp.bfloat16)
    h2 = jnp.dot(h1, w2.astype(jnp.bfloat16), preferred_element_type=jnp.float32) + b2
    h2 = jnp.maximum(h2, 0.0).astype(jnp.bfloat16)
    out = jnp.dot(h2, w3.astype(jnp.bfloat16), preferred_element_type=jnp.float32) + b3
    return out.astype(jnp.bfloat16).astype(jnp.float32)


if __name__ == "__main__":
    key = jax.random.PRNGKey(0)
    k_x, k_p = jax.random.split(key)

    # Small deterministic input consistent with the module: B=2, C=1, H=W=32 (NCHW).
    x = jax.random.normal(k_x, (2, 1, IMAGE_RESIZE[0], IMAGE_RESIZE[1]), jnp.float32)
    params = init_params(k_p)
    prepared = prepare_params(params)

    out = simple_ann_forward(x, prepared)
    out = jax.block_until_ready(out)

    ref = reference_forward(x, params)
    assert out.shape == (2, NUM_CLASSES)
    assert jnp.allclose(out, ref, atol=2e-2, rtol=2e-2), "Pallas output mismatch vs reference"

    print("KERNEL_OK")
</pallas_src>

<mosaic_0001>
module attributes {stable_mosaic.version = 11 : i64} {
  func.func @mlp_kernel(%arg0: i32, %arg1: memref<16x1024xf32, #tpu.memory_space<vmem>>, %arg2: memref<1024x512xbf16, #tpu.memory_space<vmem>>, %arg3: memref<1x512xf32, #tpu.memory_space<vmem>>, %arg4: memref<512x256xbf16, #tpu.memory_space<vmem>>, %arg5: memref<1x256xf32, #tpu.memory_space<vmem>>, %arg6: memref<256x128xbf16, #tpu.memory_space<vmem>>, %arg7: memref<1x128xf32, #tpu.memory_space<vmem>>, %arg8: memref<16x128xbf16, #tpu.memory_space<vmem>>) attributes {dimension_semantics = [#tpu.dimension_semantics<parallel>], iteration_bounds = array<i64: 2>, scalar_prefetch = 0 : i64, scratch_operands = 0 : i64, tpu.core_type = #tpu.core_type<tc>, window_params = [{transform_indices = @transform_0, window_bounds = array<i64: 16, 1024>}, {pipeline_mode = #tpu.pipeline_mode<synchronous>, transform_indices = @transform_1, window_bounds = array<i64: 1024, 512>}, {pipeline_mode = #tpu.pipeline_mode<synchronous>, transform_indices = @transform_2, window_bounds = array<i64: 1, 512>}, {pipeline_mode = #tpu.pipeline_mode<synchronous>, transform_indices = @transform_3, window_bounds = array<i64: 512, 256>}, {pipeline_mode = #tpu.pipeline_mode<synchronous>, transform_indices = @transform_4, window_bounds = array<i64: 1, 256>}, {pipeline_mode = #tpu.pipeline_mode<synchronous>, transform_indices = @transform_5, window_bounds = array<i64: 256, 128>}, {pipeline_mode = #tpu.pipeline_mode<synchronous>, transform_indices = @transform_6, window_bounds = array<i64: 1, 128>}, {transform_indices = @transform_7, window_bounds = array<i64: 16, 128>}]} {
    %c0 = arith.constant 0 : index
    %c0_0 = arith.constant 0 : index
    %0 = vector.load %arg1[%c0, %c0_0] : memref<16x1024xf32, #tpu.memory_space<vmem>>, vector<16x1024xf32>
    %1 = arith.truncf %0 : vector<16x1024xf32> to vector<16x1024xbf16>
    %c0_1 = arith.constant 0 : index
    %c0_2 = arith.constant 0 : index
    %2 = vector.load %arg2[%c0_1, %c0_2] : memref<1024x512xbf16, #tpu.memory_space<vmem>>, vector<1024x512xbf16>
    %cst = arith.constant dense<0.000000e+00> : vector<16x512xf32>
    %3 = tpu.matmul %1, %2, %cst {dimension_numbers = #tpu.dot_dimension_numbers<[1], [0], [0], [1], [0, 0, 1, 1], [], []>} : vector<16x1024xbf16>, vector<1024x512xbf16>, vector<16x512xf32> -> vector<16x512xf32>
    %c0_3 = arith.constant 0 : index
    %c0_4 = arith.constant 0 : index
    %4 = vector.load %arg3[%c0_3, %c0_4] : memref<1x512xf32, #tpu.memory_space<vmem>>, vector<1x512xf32>
    %5 = vector.broadcast %4 : vector<1x512xf32> to vector<16x512xf32>
    %6 = arith.addf %3, %5 : vector<16x512xf32>
    %cst_5 = arith.constant 0.000000e+00 : f32
    %7 = vector.broadcast %cst_5 : f32 to vector<16x512xf32>
    %8 = arith.maximumf %6, %7 : vector<16x512xf32>
    %9 = arith.truncf %8 : vector<16x512xf32> to vector<16x512xbf16>
    %c0_6 = arith.constant 0 : index
    %c0_7 = arith.constant 0 : index
    %10 = vector.load %arg4[%c0_6, %c0_7] : memref<512x256xbf16, #tpu.memory_space<vmem>>, vector<512x256xbf16>
    %cst_8 = arith.constant dense<0.000000e+00> : vector<16x256xf32>
    %11 = tpu.matmul %9, %10, %cst_8 {dimension_numbers = #tpu.dot_dimension_numbers<[1], [0], [0], [1], [0, 0, 1, 1], [], []>} : vector<16x512xbf16>, vector<512x256xbf16>, vector<16x256xf32> -> vector<16x256xf32>
    %c0_9 = arith.constant 0 : index
    %c0_10 = arith.constant 0 : index
    %12 = vector.load %arg5[%c0_9, %c0_10] : memref<1x256xf32, #tpu.memory_space<vmem>>, vector<1x256xf32>
    %13 = vector.broadcast %12 : vector<1x256xf32> to vector<16x256xf32>
    %14 = arith.addf %11, %13 : vector<16x256xf32>
    %cst_11 = arith.constant 0.000000e+00 : f32
    %15 = vector.broadcast %cst_11 : f32 to vector<16x256xf32>
    %16 = arith.maximumf %14, %15 : vector<16x256xf32>
    %17 = arith.truncf %16 : vector<16x256xf32> to vector<16x256xbf16>
    %c0_12 = arith.constant 0 : index
    %c0_13 = arith.constant 0 : index
    %18 = vector.load %arg6[%c0_12, %c0_13] : memref<256x128xbf16, #tpu.memory_space<vmem>>, vector<256x128xbf16>
    %cst_14 = arith.constant dense<0.000000e+00> : vector<16x128xf32>
    %19 = tpu.matmul %17, %18, %cst_14 {dimension_numbers = #tpu.dot_dimension_numbers<[1], [0], [0], [1], [0, 0, 1, 1], [], []>} : vector<16x256xbf16>, vector<256x128xbf16>, vector<16x128xf32> -> vector<16x128xf32>
    %c0_15 = arith.constant 0 : index
    %c0_16 = arith.constant 0 : index
    %20 = vector.load %arg7[%c0_15, %c0_16] : memref<1x128xf32, #tpu.memory_space<vmem>>, vector<1x128xf32>
    %21 = vector.broadcast %20 : vector<1x128xf32> to vector<16x128xf32>
    %22 = arith.addf %19, %21 : vector<16x128xf32>
    %23 = arith.truncf %22 : vector<16x128xf32> to vector<16x128xbf16>
    %c0_17 = arith.constant 0 : index
    %c0_18 = arith.constant 0 : index
    %24 = vector.load %arg8[%c0_17, %c0_18] : memref<16x128xbf16, #tpu.memory_space<vmem>>, vector<16x128xbf16>
    tpu.vector_store %arg8[%c0_17, %c0_18], %23 {strides = array<i32>} : memref<16x128xbf16, #tpu.memory_space<vmem>>, vector<16x128xbf16>,
    return
  }
  func.func @transform_0(%arg0: i32) -> (i32, i32) {
    %c0_i32 = arith.constant 0 : i32
    %c0_i32_0 = arith.constant 0 : i32
    return %arg0, %c0_i32 : i32, i32
  }
  func.func @transform_1(%arg0: i32) -> (i32, i32) {
    %c0_i32 = arith.constant 0 : i32
    %c0_i32_0 = arith.constant 0 : i32
    %c0_i32_1 = arith.constant 0 : i32
    return %c0_i32, %c0_i32_0 : i32, i32
  }
  func.func @transform_2(%arg0: i32) -> (i32, i32) {
    %c0_i32 = arith.constant 0 : i32
    %c0_i32_0 = arith.constant 0 : i32
    %c0_i32_1 = arith.constant 0 : i32
    return %c0_i32, %c0_i32_0 : i32, i32
  }
  func.func @transform_3(%arg0: i32) -> (i32, i32) {
    %c0_i32 = arith.constant 0 : i32
    %c0_i32_0 = arith.constant 0 : i32
    %c0_i32_1 = arith.constant 0 : i32
    return %c0_i32, %c0_i32_0 : i32, i32
  }
  func.func @transform_4(%arg0: i32) -> (i32, i32) {
    %c0_i32 = arith.constant 0 : i32
    %c0_i32_0 = arith.constant 0 : i32
    %c0_i32_1 = arith.constant 0 : i32
    return %c0_i32, %c0_i32_0 : i32, i32
  }
  func.func @transform_5(%arg0: i32) -> (i32, i32) {
    %c0_i32 = arith.constant 0 : i32
    %c0_i32_0 = arith.constant 0 : i32
    %c0_i32_1 = arith.constant 0 : i32
    return %c0_i32, %c0_i32_0 : i32, i32
  }
  func.func @transform_6(%arg0: i32) -> (i32, i32) {
    %c0_i32 = arith.constant 0 : i32
    %c0_i32_0 = arith.constant 0 : i32
    %c0_i32_1 = arith.constant 0 : i32
    return %c0_i32, %c0_i32_0 : i32, i32
  }
  func.func @transform_7(%arg0: i32) -> (i32, i32) {
    %c0_i32 = arith.constant 0 : i32
    %c0_i32_0 = arith.constant 0 : i32
    return %arg0, %c0_i32 : i32, i32
  }
}

</mosaic_0001>

<llo_original>
// kernel: tpu_custom_call.1
$region0: #{tpu_custom_call.1}
  #allocation0 [shape = 'u32[]', space=smem, size = 0x4, offset = 0x4, fixed_abs, tag = 'smem constant byte address 0x4 - core index']
  #allocation1 [shape = 'u32[144,128]{1,0:T(1,128)}', space=vmem, size = 0x12000, scoped, tag = 'internal scratch']
  %s0 = inlined_call_operand.hbm [shape: f32[32,1024], index: 0, kind: input, shape index: {}]
  %s1 = inlined_call_operand.hbm [shape: bf16[1024,512], index: 1, kind: input, shape index: {}]
  %s2 = inlined_call_operand.vmem [shape: f32[1,512], index: 2, kind: input, shape index: {}]
  %s3 = inlined_call_operand.hbm [shape: bf16[512,256], index: 3, kind: input, shape index: {}]
  %s4 = inlined_call_operand.vmem [shape: f32[1,256], index: 4, kind: input, shape index: {}]
  %s5 = inlined_call_operand.hbm [shape: bf16[256,128], index: 5, kind: input, shape index: {}]
  %s6 = inlined_call_operand.vmem [shape: f32[1,128], index: 6, kind: input, shape index: {}]
  %s7 = inlined_call_operand.hbm [shape: bf16[32,128], index: 7, kind: output, shape index: {}]
  %s8 = sld [smem:[#allocation0]]
  $region77: #{tpu_custom_call.1} parent=0
    _
  %s10 = ssub.s32 1, %s8
  %s11 = scalar_select 0, %s10, %s8
  $region1: #{tpu_custom_call.1} parent=0
    #allocation2 [shape = 'u8[131072]{0}', space=vmem, size = 0x20000, scoped, tag = 'input window, operand 0']
    #allocation3 [shape = 's32[2]{0}', space=sflag, size = 0x8, scoped, tag = 'scoped memory for tpu_custom_call.1']
    #allocation4 [shape = 's32[2]{0}', space=sflag, size = 0x8, scoped, tag = 'scoped memory for tpu_custom_call.1']
    #allocation5 [shape = 'u8[1048576]{0}', space=vmem, size = 0x100000, scoped, tag = 'input window, operand 1, single buffered']
    #allocation6 [shape = 's32[1]{0}', space=sflag, size = 0x4, scoped, tag = 'scoped memory for tpu_custom_call.1']
    #allocation7 [shape = 'u8[262144]{0}', space=vmem, size = 0x40000, scoped, tag = 'input window, operand 3, single buffered']
    #allocation8 [shape = 'u8[65536]{0}', space=vmem, size = 0x10000, scoped, tag = 'input window, operand 5, single buffered']
    #allocation9 [shape = 's32[1]{0}', space=sflag, size = 0x4, scoped, tag = 'scoped memory for tpu_custom_call.1']
    #allocation10 [shape = 'u8[8192]{0}', space=vmem, size = 0x2000, scoped, tag = 'output window, operand 0']
    %12 = vsyncpa [#allocation3], 0
    %s13 = scalar_lea.sflag [#allocation3], 1
    %14 = vsyncpa %s13, 0
    %15 = vsyncpa [#allocation6], 0
    %16 = vsyncpa [#allocation9], 0
    %17 = vsyncpa [#allocation4], 0
    %s18 = scalar_lea.sflag [#allocation4], 1
    %19 = vsyncpa %s18, 0
    loop: start=0, step=1, limit=4
    $region2: #{tpu_custom_call.1} parent=1 // loop_pre_header
      _
    $region3: #{tpu_custom_call.1} parent=1 // loop_header
      %s21 = sphi 0, %s25
      %p22 = scmp.ge.s32.totalorder %s21, 4
      %s31 = sphi 0, %s33
      %s34 = sphi 0, %s31
      %s35 = sphi 0, %s34
      %s51 = sphi 0, %s35
      %s55 = sphi 0, %s55
      %s57 = sphi 0, %s55
      %s58 = sphi 0, %s57
      %s72 = sphi 0, %s58
      %s76 = sphi 0, %s76
      %s78 = sphi 0, %s76
      %s79 = sphi 0, %s78
      %s93 = sphi 0, %s79
      %s97 = sphi 0, %s97
      %s99 = sphi 0, %s97
      %s100 = sphi 0, %s99
      %s114 = sphi 0, %s100
      %s118 = sphi 0, %s118
      %s120 = sphi 0, %s118
      %s121 = sphi 0, %s120
      %s135 = sphi 0, %s121
      %s139 = sphi 0, %s139
      %s141 = sphi 0, %s139
      %s142 = sphi 0, %s141
      %s156 = sphi 0, %s142
      %s160 = sphi 0, %s160
      %s162 = sphi 0, %s160
      %s163 = sphi 0, %s162
      %s177 = sphi 0, %s163
      %s183 = sphi 0, %s185
      %s186 = sphi 0, %s183
      %s187 = sphi 0, %s186
      %s203 = sphi 0, %s187
    $region4: #{tpu_custom_call.1} parent=1 // loop_header_branch
      %24 = sbr.rel (%p22) target = $region8
    $region5: #{tpu_custom_call.1} parent=1 // loop_body
      %s26 = ssub.s32 %s21, 1
      %s27 = ssub.s32 %s21, 2
      %s28 = sadd.s32 %s21, 1
      %s29 = ssub.s32 %s21, %s28
      %p30 = scmp.eq.s32.totalorder %s29, 0
      %s32 = sadd.s32 %s31, 1
      %s33 = scalar_select %p30, %s31, %s32
      %p36 = pneg %p30
      %p37 = scmp.eq.s32.totalorder %s21, 1
      %p38 = por %p36, %p37
      %p39 = scmp.ne.s32.totalorder %s31, %s34
      %p40 = scmp.eq.s32.totalorder %s21, 0
      %p41 = por %p39, %p40
      %p42 = scmp.ne.s32.totalorder %s31, %s34
      %p43 = scmp.eq.s32.totalorder %s26, 1
      %p44 = por %p42, %p43
      %p45 = scmp.ne.s32.totalorder %s34, %s35
      %p46 = scmp.eq.s32.totalorder %s26, 0
      %p47 = por %p45, %p46
      %p48 = scmp.ne.s32.totalorder %s34, %s35
      %p49 = scmp.eq.s32.totalorder %s27, 1
      %p50 = por %p48, %p49
      %p52 = scmp.ne.s32.totalorder %s35, %s51
      %p53 = scmp.eq.s32.totalorder %s27, 0
      %p54 = por %p52, %p53
      %s56 = sadd.s32 %s55, 1
      %p59 = scmp.eq.s32.totalorder %s21, 1
      %p60 = scmp.ne.s32.totalorder %s55, %s57
      %p61 = scmp.eq.s32.totalorder %s21, 0
      %p62 = por %p60, %p61
      %p63 = scmp.ne.s32.totalorder %s55, %s57
      %p64 = scmp.eq.s32.totalorder %s26, 1
      %p65 = por %p63, %p64
      %p66 = scmp.ne.s32.totalorder %s57, %s58
      %p67 = scmp.eq.s32.totalorder %s26, 0
      %p68 = por %p66, %p67
      %p69 = scmp.ne.s32.totalorder %s57, %s58
      %p70 = scmp.eq.s32.totalorder %s27, 1
      %p71 = por %p69, %p70
      %p73 = scmp.ne.s32.totalorder %s58, %s72
      %p74 = scmp.eq.s32.totalorder %s27, 0
      %p75 = por %p73, %p74
      %s77 = sadd.s32 %s76, 1
      %p80 = scmp.eq.s32.totalorder %s21, 1
      %p81 = scmp.ne.s32.totalorder %s76, %s78
      %p82 = scmp.eq.s32.totalorder %s21, 0
      %p83 = por %p81, %p82
      %p84 = scmp.ne.s32.totalorder %s76, %s78
      %p85 = scmp.eq.s32.totalorder %s26, 1
      %p86 = por %p84, %p85
      %p87 = scmp.ne.s32.totalorder %s78, %s79
      %p88 = scmp.eq.s32.totalorder %s26, 0
      %p89 = por %p87, %p88
      %p90 = scmp.ne.s32.totalorder %s78, %s79
      %p91 = scmp.eq.s32.totalorder %s27, 1
      %p92 = por %p90, %p91
      %p94 = scmp.ne.s32.totalorder %s79, %s93
      %p95 = scmp.eq.s32.totalorder %s27, 0
      %p96 = por %p94, %p95
      %s98 = sadd.s32 %s97, 1
      %p101 = scmp.eq.s32.totalorder %s21, 1
      %p102 = scmp.ne.s32.totalorder %s97, %s99
      %p103 = scmp.eq.s32.totalorder %s21, 0
      %p104 = por %p102, %p103
      %p105 = scmp.ne.s32.totalorder %s97, %s99
      %p106 = scmp.eq.s32.totalorder %s26, 1
      %p107 = por %p105, %p106
      %p108 = scmp.ne.s32.totalorder %s99, %s100
      %p109 = scmp.eq.s32.totalorder %s26, 0
      %p110 = por %p108, %p109
      %p111 = scmp.ne.s32.totalorder %s99, %s100
      %p112 = scmp.eq.s32.totalorder %s27, 1
      %p113 = por %p111, %p112
      %p115 = scmp.ne.s32.totalorder %s100, %s114
      %p116 = scmp.eq.s32.totalorder %s27, 0
      %p117 = por %p115, %p116
      %s119 = sadd.s32 %s118, 1
      %p122 = scmp.eq.s32.totalorder %s21, 1
      %p123 = scmp.ne.s32.totalorder %s118, %s120
      %p124 = scmp.eq.s32.totalorder %s21, 0
      %p125 = por %p123, %p124
      %p126 = scmp.ne.s32.totalorder %s118, %s120
      %p127 = scmp.eq.s32.totalorder %s26, 1
      %p128 = por %p126, %p127
      %p129 = scmp.ne.s32.totalorder %s120, %s121
      %p130 = scmp.eq.s32.totalorder %s26, 0
      %p131 = por %p129, %p130
      %p132 = scmp.ne.s32.totalorder %s120, %s121
      %p133 = scmp.eq.s32.totalorder %s27, 1
      %p134 = por %p132, %p133
      %p136 = scmp.ne.s32.totalorder %s121, %s135
      %p137 = scmp.eq.s32.totalorder %s27, 0
      %p138 = por %p136, %p137
      %s140 = sadd.s32 %s139, 1
      %p143 = scmp.eq.s32.totalorder %s21, 1
      %p144 = scmp.ne.s32.totalorder %s139, %s141
      %p145 = scmp.eq.s32.totalorder %s21, 0
      %p146 = por %p144, %p145
      %p147 = scmp.ne.s32.totalorder %s139, %s141
      %p148 = scmp.eq.s32.totalorder %s26, 1
      %p149 = por %p147, %p148
      %p150 = scmp.ne.s32.totalorder %s141, %s142
      %p151 = scmp.eq.s32.totalorder %s26, 0
      %p152 = por %p150, %p151
      %p153 = scmp.ne.s32.totalorder %s141, %s142
      %p154 = scmp.eq.s32.totalorder %s27, 1
      %p155 = por %p153, %p154
      %p157 = scmp.ne.s32.totalorder %s142, %s156
      %p158 = scmp.eq.s32.totalorder %s27, 0
      %p159 = por %p157, %p158
      %s161 = sadd.s32 %s160, 1
      %p164 = scmp.eq.s32.totalorder %s21, 1
      %p165 = scmp.ne.s32.totalorder %s160, %s162
      %p166 = scmp.eq.s32.totalorder %s21, 0
      %p167 = por %p165, %p166
      %p168 = scmp.ne.s32.totalorder %s160, %s162
      %p169 = scmp.eq.s32.totalorder %s26, 1
      %p170 = por %p168, %p169
      %p171 = scmp.ne.s32.totalorder %s162, %s163
      %p172 = scmp.eq.s32.totalorder %s26, 0
      %p173 = por %p171, %p172
      %p174 = scmp.ne.s32.totalorder %s162, %s163
      %p175 = scmp.eq.s32.totalorder %s27, 1
      %p176 = por %p174, %p175
      %p178 = scmp.ne.s32.totalorder %s163, %s177
      %p179 = scmp.eq.s32.totalorder %s27, 0
      %p180 = por %p178, %p179
      %s181 = ssub.s32 %s21, %s28
      %p182 = scmp.eq.s32.totalorder %s181, 0
      %s184 = sadd.s32 %s183, 1
      %s185 = scalar_select %p182, %s183, %s184
      %p188 = pneg %p182
      %p189 = scmp.eq.s32.totalorder %s21, 1
      %p190 = por %p188, %p189
      %p191 = scmp.ne.s32.totalorder %s183, %s186
      %p192 = scmp.eq.s32.totalorder %s21, 0
      %p193 = por %p191, %p192
      %p194 = scmp.ne.s32.totalorder %s183, %s186
      %p195 = scmp.eq.s32.totalorder %s26, 1
      %p196 = por %p194, %p195
      %p197 = scmp.ne.s32.totalorder %s186, %s187
      %p198 = scmp.eq.s32.totalorder %s26, 0
      %p199 = por %p197, %p198
      %p200 = scmp.ne.s32.totalorder %s186, %s187
      %p201 = scmp.eq.s32.totalorder %s27, 1
      %p202 = por %p200, %p201
      %p204 = scmp.ne.s32.totalorder %s187, %s203
      %p205 = scmp.eq.s32.totalorder %s27, 0
      %p206 = por %p204, %p205
      %p207 = scmp.le.s32.totalorder 1, %s21
      %p208 = scmp.lt.s32.totalorder %s21, 3
      %p209 = pnand %p207, %p208
      %p210 = pneg %p209
      // Predicated region
      $region9: #{tpu_custom_call.1} parent=5 // pred_check
        _
      $region10: #{tpu_custom_call.1} parent=5 // pred_check_branch
        %212 = sbr.rel (%p209) target = $region12
      $region11: #{tpu_custom_call.1} parent=5 // pred_region
        %s213 = ssub.s32 %s21, 1
        // Predicated region
        $region13: #{tpu_custom_call.1} parent=11 // pred_check
          %p214 = pneg %p68
        $region14: #{tpu_custom_call.1} parent=11 // pred_check_branch
          %216 = sbr.rel (%p214) target = $region16
        $region15: #{tpu_custom_call.1} parent=11 // pred_region
          %s218 = ssub.s32 32768, 32768
          %219 = vsyncadd [#allocation6], %s218
          %s220 = sshll.u32 [#allocation5], 4
          %s221 = int_to_ptr.vmem [resolvable:$true] %s220
          %226 = dma.hbm_to_vmem [thread:$0]  %s1, 32768, %s221, [#allocation6], 256, 256, 16
        $region16: #{tpu_custom_call.1} parent=11 // pred_fallthru
          _
        // Predicated region
        $region17: #{tpu_custom_call.1} parent=11 // pred_check
          %p227 = pneg %p89
        $region18: #{tpu_custom_call.1} parent=11 // pred_check_branch
          %229 = sbr.rel (%p227) target = $region20
        $region19: #{tpu_custom_call.1} parent=11 // pred_region
          _
        $region20: #{tpu_custom_call.1} parent=11 // pred_fallthru
          _
        // Predicated region
        $region21: #{tpu_custom_call.1} parent=11 // pred_check
          %p230 = pneg %p110
        $region22: #{tpu_custom_call.1} parent=11 // pred_check_branch
          %232 = sbr.rel (%p230) target = $region24
        $region23: #{tpu_custom_call.1} parent=11 // pred_region
          %s234 = ssub.s32 8192, 8192
          %235 = vsyncadd [#allocation6], %s234
          %s236 = sshll.u32 [#allocation7], 4
          %s237 = int_to_ptr.vmem [resolvable:$true] %s236
          %242 = dma.hbm_to_vmem [thread:$0]  %s3, 8192, %s237, [#allocation6], 128, 128, 8
        $region24: #{tpu_custom_call.1} parent=11 // pred_fallthru
          _
        // Predicated region
        $region25: #{tpu_custom_call.1} parent=11 // pred_check
          %p243 = pneg %p131
        $region26: #{tpu_custom_call.1} parent=11 // pred_check_branch
          %245 = sbr.rel (%p243) target = $region28
        $region27: #{tpu_custom_call.1} parent=11 // pred_region
          _
        $region28: #{tpu_custom_call.1} parent=11 // pred_fallthru
          _
        // Predicated region
        $region29: #{tpu_custom_call.1} parent=11 // pred_check
          %p246 = pneg %p152
        $region30: #{tpu_custom_call.1} parent=11 // pred_check_branch
          %248 = sbr.rel (%p246) target = $region32
        $region31: #{tpu_custom_call.1} parent=11 // pred_region
          %s250 = ssub.s32 2048, 2048
          %251 = vsyncadd [#allocation9], %s250
          %s252 = sshll.u32 [#allocation8], 4
          %s253 = int_to_ptr.vmem [resolvable:$true] %s252
          %258 = dma.hbm_to_vmem [thread:$0]  %s5, 2048, %s253, [#allocation9], 64, 64, 4
        $region32: #{tpu_custom_call.1} parent=11 // pred_fallthru
          _
        // Predicated region
        $region33: #{tpu_custom_call.1} parent=11 // pred_check
          %p259 = pneg %p173
        $region34: #{tpu_custom_call.1} parent=11 // pred_check_branch
          %261 = sbr.rel (%p259) target = $region36
        $region35: #{tpu_custom_call.1} parent=11 // pred_region
          _
        $region36: #{tpu_custom_call.1} parent=11 // pred_fallthru
          _
      $region12: #{tpu_custom_call.1} parent=5 // pred_fallthru
        _
      %p262 = scmp.lt.s32.totalorder %s21, 2
      // Predicated region
      $region37: #{tpu_custom_call.1} parent=5 // pred_check
        %p263 = pneg %p262
      $region38: #{tpu_custom_call.1} parent=5 // pred_check_branch
        %265 = sbr.rel (%p263) target = $region40
      $region39: #{tpu_custom_call.1} parent=5 // pred_region
        // Predicated region
        $region41: #{tpu_custom_call.1} parent=39 // pred_check
          %p266 = pneg %p41
        $region42: #{tpu_custom_call.1} parent=39 // pred_check_branch
          %268 = sbr.rel (%p266) target = $region44
        $region43: #{tpu_custom_call.1} parent=39 // pred_region
          %s269 = sand.u32 %s31, 1
          %s270 = scalar_lea.sflag [#allocation3], %s269
          %s271 = sand.u32 %s31, 1
          %s272 = smul.addr %s271, 128
          %s273 = scalar_lea.vmem [#allocation2], %s272
          %s274 = smul.u32 2, %s21
          %s276 = ssub.s32 2048, 2048
          %277 = vsyncadd %s270, %s276
          %s278 = smul.addr %s274, 8
          %s279 = smul.addr %s278, 128
          %s280 = scalar_lea.hbm %s0, %s279
          %s281 = sshll.u32 %s273, 4
          %s282 = int_to_ptr.vmem [resolvable:$true] %s281
          %287 = dma.hbm_to_vmem [thread:$0]  %s280, 2048, %s282, %s270, 1024, 1024, 64
        $region44: #{tpu_custom_call.1} parent=39 // pred_fallthru
          _
      $region40: #{tpu_custom_call.1} parent=5 // pred_fallthru
        _
      %p288 = scmp.le.s32.totalorder 1, %s21
      %p289 = scmp.lt.s32.totalorder %s21, 3
      %p290 = pnand %p288, %p289
      %p291 = pneg %p290
      // Predicated region
      $region45: #{tpu_custom_call.1} parent=5 // pred_check
        _
      $region46: #{tpu_custom_call.1} parent=5 // pred_check_branch
        %293 = sbr.rel (%p290) target = $region48
      $region47: #{tpu_custom_call.1} parent=5 // pred_region
        %s294 = ssub.s32 %s21, 1
        %s295 = sand.u32 %s34, 1
        %s296 = scalar_lea.sflag [#allocation3], %s295
        %s297 = sand.u32 %s34, 1
        %s298 = smul.addr %s297, 128
        %s299 = scalar_lea.vmem [#allocation2], %s298
        // Predicated region
        $region49: #{tpu_custom_call.1} parent=47 // pred_check
          %p300 = pneg %p47
        $region50: #{tpu_custom_call.1} parent=47 // pred_check_branch
          %302 = sbr.rel (%p300) target = $region52
        $region51: #{tpu_custom_call.1} parent=47 // pred_region
          %303 = dma.done %s296, 2048
        $region52: #{tpu_custom_call.1} parent=47 // pred_fallthru
          _
        // Predicated region
        $region53: #{tpu_custom_call.1} parent=47 // pred_check
          %p304 = pneg %p68
        $region54: #{tpu_custom_call.1} parent=47 // pred_check_branch
          %306 = sbr.rel (%p304) target = $region56
        $region55: #{tpu_custom_call.1} parent=47 // pred_region
          %307 = dma.done [#allocation6], 32768
        $region56: #{tpu_custom_call.1} parent=47 // pred_fallthru
          _
        // Predicated region
        $region57: #{tpu_custom_call.1} parent=47 // pred_check
          %p308 = pneg %p110
        $region58: #{tpu_custom_call.1} parent=47 // pred_check_branch
          %310 = sbr.rel (%p308) target = $region60
        $region59: #{tpu_custom_call.1} parent=47 // pred_region
          %311 = dma.done [#allocation6], 8192
        $region60: #{tpu_custom_call.1} parent=47 // pred_fallthru
          _
        // Predicated region
        $region61: #{tpu_custom_call.1} parent=47 // pred_check
          %p312 = pneg %p152
        $region62: #{tpu_custom_call.1} parent=47 // pred_check_branch
          %314 = sbr.rel (%p312) target = $region64
        $region63: #{tpu_custom_call.1} parent=47 // pred_region
          %315 = dma.done [#allocation9], 2048
        $region64: #{tpu_custom_call.1} parent=47 // pred_fallthru
          _
        %s316 = sand.u32 %s34, 1
        %s317 = scalar_lea.sflag [#allocation3], %s316
        %s318 = sand.u32 %s34, 1
        %s319 = smul.addr %s318, 128
        %s320 = scalar_lea.vmem [#allocation2], %s319
        %p321 = pneg %p47
        %p322 = pneg %p44
        %p323 = pneg %p68
        %p324 = pneg %p65
        %p325 = pneg %p89
        %p326 = pneg %p86
        %p327 = pneg %p110
        %p328 = pneg %p107
        %p329 = pneg %p131
        %p330 = pneg %p128
        %p331 = pneg %p152
        %p332 = pneg %p149
        %p333 = pneg %p173
        %p334 = pneg %p170
        %p335 = pneg %p199
        %p336 = pneg %p196
        %s337 = sand.u32 %s186, 1
        %s338 = scalar_lea.sflag [#allocation4], %s337
        %s339 = sand.u32 %s186, 1
        %s340 = smul.addr %s339, 8
        %s341 = scalar_lea.vmem [#allocation10], %s340
        %s342 = smul.u32 2, %s26
        %s343 = smul.u32 2, %s26
        %v345 = vld [vmem:[%s299] sm:$0xff]
        %v346 = vld [vmem:[%s299 + $0x8] sm:$0xff]
        %v347 = vld [vmem:[%s299 + $0x10] sm:$0xff]
        %v348 = vld [vmem:[%s299 + $0x18] sm:$0xff]
        %v349 = vld [vmem:[%s299 + $0x20] sm:$0xff]
        %v350 = vld [vmem:[%s299 + $0x28] sm:$0xff]
        %v351 = vld [vmem:[%s299 + $0x30] sm:$0xff]
        %v352 = vld [vmem:[%s299 + $0x38] sm:$0xff]
        %v353 = vld [vmem:[%s299 + $0x40] sm:$0xff]
        %v354 = vld [vmem:[%s299 + $0x48] sm:$0xff]
        %v355 = vld [vmem:[%s299 + $0x50] sm:$0xff]
        %v356 = vld [vmem:[%s299 + $0x58] sm:$0xff]
        %v357 = vld [vmem:[%s299 + $0x60] sm:$0xff]
        %v358 = vld [vmem:[%s299 + $0x68] sm:$0xff]
        %v359 = vld [vmem:[%s299 + $0x70] sm:$0xff]
        %v360 = vld [vmem:[%s299 + $0x78] sm:$0xff]
        %v361 = vpack.c.bf16 %v353, %v345
        %v362 = vpack.c.bf16 %v354, %v346
        %v363 = vpack.c.bf16 %v355, %v347
        %v364 = vpack.c.bf16 %v356, %v348
        %v365 = vpack.c.bf16 %v357, %v349
        %v366 = vpack.c.bf16 %v358, %v350
        %v367 = vpack.c.bf16 %v359, %v351
        %v368 = vpack.c.bf16 %v360, %v352
        %v369 = vld [vmem:[#allocation5] sm:$0xff]
        %v370 = vld [vmem:[#allocation5 + $0x8] sm:$0xff]
        %v371 = vld [vmem:[#allocation5 + $0x10] sm:$0xff]
        %v372 = vld [vmem:[#allocation5 + $0x18] sm:$0xff]
        %v373 = vld [vmem:[#allocation5 + $0x20] sm:$0xff]
        %v374 = vld [vmem:[#allocation5 + $0x28] sm:$0xff]
        %v375 = vld [vmem:[#allocation5 + $0x30] sm:$0xff]
        %v376 = vld [vmem:[#allocation5 + $0x38] sm:$0xff]
        %v377 = vld [vmem:[#allocation5 + $0x40] sm:$0xff]
        %v378 = vld [vmem:[#allocation5 + $0x48] sm:$0xff]
        %v379 = vld [vmem:[#allocation5 + $0x50] sm:$0xff]
        %v380 = vld [vmem:[#allocation5 + $0x58] sm:$0xff]
        %v381 = vld [vmem:[#allocation5 + $0x60] sm:$0xff]
        %v382 = vld [vmem:[#allocation5 + $0x68] sm:$0xff]
        %v383 = vld [vmem:[#allocation5 + $0x70] sm:$0xff]
        %v384 = vld [vmem:[#allocation5 + $0x78] sm:$0xff]
        %v385 = vld [vmem:[#allocation5 + $0x80] sm:$0xff]
        %v386 = vld [vmem:[#allocation5 + $0x88] sm:$0xff]
        %v387 = vld [vmem:[#allocation5 + $0x90] sm:$0xff]
        %v388 = vld [vmem:[#allocation5 + $0x98] sm:$0xff]
        %v389 = vld [vmem:[#allocation5 + $0xa0] sm:$0xff]
        %v390 = vld [vmem:[#allocation5 + $0xa8] sm:$0xff]
        %v391 = vld [vmem:[#allocation5 + $0xb0] sm:$0xff]
        %v392 = vld [vmem:[#allocation5 + $0xb8] sm:$0xff]
        %v393 = vld [vmem:[#allocation5 + $0xc0] sm:$0xff]
        %v394 = vld [vmem:[#allocation5 + $0xc8] sm:$0xff]
        %v395 = vld [vmem:[#allocation5 + $0xd0] sm:$0xff]
        %v396 = vld [vmem:[#allocation5 + $0xd8] sm:$0xff]
        %v397 = vld [vmem:[#allocation5 + $0xe0] sm:$0xff]
        %v398 = vld [vmem:[#allocation5 + $0xe8] sm:$0xff]
        %v399 = vld [vmem:[#allocation5 + $0xf0] sm:$0xff]
        %v400 = vld [vmem:[#allocation5 + $0xf8] sm:$0xff]
        %v401 = vld [vmem:[#allocation5 + $0x100] sm:$0xff]
        %v402 = vld [vmem:[#allocation5 + $0x108] sm:$0xff]
        %v403 = vld [vmem:[#allocation5 + $0x110] sm:$0xff]
        %v404 = vld [vmem:[#allocation5 + $0x118] sm:$0xff]
        %v405 = vld [vmem:[#allocation5 + $0x120] sm:$0xff]
        %v406 = vld [vmem:[#allocation5 + $0x128] sm:$0xff]
        %v407 = vld [vmem:[#allocation5 + $0x130] sm:$0xff]
        %v408 = vld [vmem:[#allocation5 + $0x138] sm:$0xff]
        %v409 = vld [vmem:[#allocation5 + $0x140] sm:$0xff]
        %v410 = vld [vmem:[#allocation5 + $0x148] sm:$0xff]
        %v411 = vld [vmem:[#allocation5 + $0x150] sm:$0xff]
        %v412 = vld [vmem:[#allocation5 + $0x158] sm:$0xff]
        %v413 = vld [vmem:[#allocation5 + $0x160] sm:$0xff]
        %v414 = vld [vmem:[#allocation5 + $0x168] sm:$0xff]
        %v415 = vld [vmem:[#allocation5 + $0x170] sm:$0xff]
        %v416 = vld [vmem:[#allocation5 + $0x178] sm:$0xff]
        %v417 = vld [vmem:[#allocation5 + $0x180] sm:$0xff]
        %v418 = vld [vmem:[#allocation5 + $0x188] sm:$0xff]
        %v419 = vld [vmem:[#allocation5 + $0x190] sm:$0xff]
        %v420 = vld [vmem:[#allocation5 + $0x198] sm:$0xff]
        %v421 = vld [vmem:[#allocation5 + $0x1a0] sm:$0xff]
        %v422 = vld [vmem:[#allocation5 + $0x1a8] sm:$0xff]
        %v423 = vld [vmem:[#allocation5 + $0x1b0] sm:$0xff]
        %v424 = vld [vmem:[#allocation5 + $0x1b8] sm:$0xff]
        %v425 = vld [vmem:[#allocation5 + $0x1c0] sm:$0xff]
        %v426 = vld [vmem:[#allocation5 + $0x1c8] sm:$0xff]
        %v427 = vld [vmem:[#allocation5 + $0x1d0] sm:$0xff]
        %v428 = vld [vmem:[#allocation5 + $0x1d8] sm:$0xff]
        %v429 = vld [vmem:[#allocation5 + $0x1e0] sm:$0xff]
        %v430 = vld [vmem:[#allocation5 + $0x1e8] sm:$0xff]
        %v431 = vld [vmem:[#allocation5 + $0x1f0] sm:$0xff]
        %v432 = vld [vmem:[#allocation5 + $0x1f8] sm:$0xff]
        %v433 = vld [vmem:[#allocation5 + $0x200] sm:$0xff]
        %v434 = vld [vmem:[#allocation5 + $0x208] sm:$0xff]
        %v435 = vld [vmem:[#allocation5 + $0x210] sm:$0xff]
        %v436 = vld [vmem:[#allocation5 + $0x218] sm:$0xff]
        %v437 = vld [vmem:[#allocation5 + $0x220] sm:$0xff]
        %v438 = vld [vmem:[#allocation5 + $0x228] sm:$0xff]
        %v439 = vld [vmem:[#allocation5 + $0x230] sm:$0xff]
        %v440 = vld [vmem:[#allocation5 + $0x238] sm:$0xff]
        %v441 = vld [vmem:[#allocation5 + $0x240] sm:$0xff]
        %v442 = vld [vmem:[#allocation5 + $0x248] sm:$0xff]
        %v443 = vld [vmem:[#allocation5 + $0x250] sm:$0xff]
        %v444 = vld [vmem:[#allocation5 + $0x258] sm:$0xff]
        %v445 = vld [vmem:[#allocation5 + $0x260] sm:$0xff]
        %v446 = vld [vmem:[#allocation5 + $0x268] sm:$0xff]
        %v447 = vld [vmem:[#allocation5 + $0x270] sm:$0xff]
        %v448 = vld [vmem:[#allocation5 + $0x278] sm:$0xff]
        %v449 = vld [vmem:[#allocation5 + $0x280] sm:$0xff]
        %v450 = vld [vmem:[#allocation5 + $0x288] sm:$0xff]
        %v451 = vld [vmem:[#allocation5 + $0x290] sm:$0xff]
        %v452 = vld [vmem:[#allocation5 + $0x298] sm:$0xff]
        %v453 = vld [vmem:[#allocation5 + $0x2a0] sm:$0xff]
        %v454 = vld [vmem:[#allocation5 + $0x2a8] sm:$0xff]
        %v455 = vld [vmem:[#allocation5 + $0x2b0] sm:$0xff]
        %v456 = vld [vmem:[#allocation5 + $0x2b8] sm:$0xff]
        %v457 = vld [vmem:[#allocation5 + $0x2c0] sm:$0xff]
        %v458 = vld [vmem:[#allocation5 + $0x2c8] sm:$0xff]
        %v459 = vld [vmem:[#allocation5 + $0x2d0] sm:$0xff]
        %v460 = vld [vmem:[#allocation5 + $0x2d8] sm:$0xff]
        %v461 = vld [vmem:[#allocation5 + $0x2e0] sm:$0xff]
        %v462 = vld [vmem:[#allocation5 + $0x2e8] sm:$0xff]
        %v463 = vld [vmem:[#allocation5 + $0x2f0] sm:$0xff]
        %v464 = vld [vmem:[#allocation5 + $0x2f8] sm:$0xff]
        %v465 = vld [vmem:[#allocation5 + $0x300] sm:$0xff]
        %v466 = vld [vmem:[#allocation5 + $0x308] sm:$0xff]
        %v467 = vld [vmem:[#allocation5 + $0x310] sm:$0xff]
        %v468 = vld [vmem:[#allocation5 + $0x318] sm:$0xff]
        %v469 = vld [vmem:[#allocation5 + $0x320] sm:$0xff]
        %v470 = vld [vmem:[#allocation5 + $0x328] sm:$0xff]
        %v471 = vld [vmem:[#allocation5 + $0x330] sm:$0xff]
        %v472 = vld [vmem:[#allocation5 + $0x338] sm:$0xff]
        %v473 = vld [vmem:[#allocation5 + $0x340] sm:$0xff]
        %v474 = vld [vmem:[#allocation5 + $0x348] sm:$0xff]
        %v475 = vld [vmem:[#allocation5 + $0x350] sm:$0xff]
        %v476 = vld [vmem:[#allocation5 + $0x358] sm:$0xff]
        %v477 = vld [vmem:[#allocation5 + $0x360] sm:$0xff]
        %v478 = vld [vmem:[#allocation5 + $0x368] sm:$0xff]
        %v479 = vld [vmem:[#allocation5 + $0x370] sm:$0xff]
        %v480 = vld [vmem:[#allocation5 + $0x378] sm:$0xff]
        %v481 = vld [vmem:[#allocation5 + $0x380] sm:$0xff]
        %v482 = vld [vmem:[#allocation5 + $0x388] sm:$0xff]
        %v483 = vld [vmem:[#allocation5 + $0x390] sm:$0xff]
        %v484 = vld [vmem:[#allocation5 + $0x398] sm:$0xff]
        %v485 = vld [vmem:[#allocation5 + $0x3a0] sm:$0xff]
        %v486 = vld [vmem:[#allocation5 + $0x3a8] sm:$0xff]
        %v487 = vld [vmem:[#allocation5 + $0x3b0] sm:$0xff]
        %v488 = vld [vmem:[#allocation5 + $0x3b8] sm:$0xff]
        %v489 = vld [vmem:[#allocation5 + $0x3c0] sm:$0xff]
        %v490 = vld [vmem:[#allocation5 + $0x3c8] sm:$0xff]
        %v491 = vld [vmem:[#allocation5 + $0x3d0] sm:$0xff]
        %v492 = vld [vmem:[#allocation5 + $0x3d8] sm:$0xff]
        %v493 = vld [vmem:[#allocation5 + $0x3e0] sm:$0xff]
        %v494 = vld [vmem:[#allocation5 + $0x3e8] sm:$0xff]
        %v495 = vld [vmem:[#allocation5 + $0x3f0] sm:$0xff]
        %v496 = vld [vmem:[#allocation5 + $0x3f8] sm:$0xff]
        %v497 = vld [vmem:[#allocation5 + $0x400] sm:$0xff]
        %v498 = vld [vmem:[#allocation5 + $0x408] sm:$0xff]
        %v499 = vld [vmem:[#allocation5 + $0x410] sm:$0xff]
        %v500 = vld [vmem:[#allocation5 + $0x418] sm:$0xff]
        %v501 = vld [vmem:[#allocation5 + $0x420] sm:$0xff]
        %v502 = vld [vmem:[#allocation5 + $0x428] sm:$0xff]
        %v503 = vld [vmem:[#allocation5 + $0x430] sm:$0xff]
        %v504 = vld [vmem:[#allocation5 + $0x438] sm:$0xff]
        %v505 = vld [vmem:[#allocation5 + $0x440] sm:$0xff]
        %v506 = vld [vmem:[#allocation5 + $0x448] sm:$0xff]
        %v507 = vld [vmem:[#allocation5 + $0x450] sm:$0xff]
        %v508 = vld [vmem:[#allocation5 + $0x458] sm:$0xff]
        %v509 = vld [vmem:[#allocation5 + $0x460] sm:$0xff]
        %v510 = vld [vmem:[#allocation5 + $0x468] sm:$0xff]
        %v511 = vld [vmem:[#allocation5 + $0x470] sm:$0xff]
        %v512 = vld [vmem:[#allocation5 + $0x478] sm:$0xff]
        %v513 = vld [vmem:[#allocation5 + $0x480] sm:$0xff]
        %v514 = vld [vmem:[#allocation5 + $0x488] sm:$0xff]
        %v515 = vld [vmem:[#allocation5 + $0x490] sm:$0xff]
        %v516 = vld [vmem:[#allocation5 + $0x498] sm:$0xff]
        %v517 = vld [vmem:[#allocation5 + $0x4a0] sm:$0xff]
        %v518 = vld [vmem:[#allocation5 + $0x4a8] sm:$0xff]
        %v519 = vld [vmem:[#allocation5 + $0x4b0] sm:$0xff]
        %v520 = vld [vmem:[#allocation5 + $0x4b8] sm:$0xff]
        %v521 = vld [vmem:[#allocation5 + $0x4c0] sm:$0xff]
        %v522 = vld [vmem:[#allocation5 + $0x4c8] sm:$0xff]
        %v523 = vld [vmem:[#allocation5 + $0x4d0] sm:$0xff]
        %v524 = vld [vmem:[#allocation5 + $0x4d8] sm:$0xff]
        %v525 = vld [vmem:[#allocation5 + $0x4e0] sm:$0xff]
        %v526 = vld [vmem:[#allocation5 + $0x4e8] sm:$0xff]
        %v527 = vld [vmem:[#allocation5 + $0x4f0] sm:$0xff]
        %v528 = vld [vmem:[#allocation5 + $0x4f8] sm:$0xff]
        %v529 = vld [vmem:[#allocation5 + $0x500] sm:$0xff]
        %v530 = vld [vmem:[#allocation5 + $0x508] sm:$0xff]
        %v531 = vld [vmem:[#allocation5 + $0x510] sm:$0xff]
        %v532 = vld [vmem:[#allocation5 + $0x518] sm:$0xff]
        %v533 = vld [vmem:[#allocation5 + $0x520] sm:$0xff]
        %v534 = vld [vmem:[#allocation5 + $0x528] sm:$0xff]
        %v535 = vld [vmem:[#allocation5 + $0x530] sm:$0xff]
        %v536 = vld [vmem:[#allocation5 + $0x538] sm:$0xff]
        %v537 = vld [vmem:[#allocation5 + $0x540] sm:$0xff]
        %v538 = vld [vmem:[#allocation5 + $0x548] sm:$0xff]
        %v539 = vld [vmem:[#allocation5 + $0x550] sm:$0xff]
        %v540 = vld [vmem:[#allocation5 + $0x558] sm:$0xff]
        %v541 = vld [vmem:[#allocation5 + $0x560] sm:$0xff]
        %v542 = vld [vmem:[#allocation5 + $0x568] sm:$0xff]
        %v543 = vld [vmem:[#allocation5 + $0x570] sm:$0xff]
        %v544 = vld [vmem:[#allocation5 + $0x578] sm:$0xff]
        %v545 = vld [vmem:[#allocation5 + $0x580] sm:$0xff]
        %v546 = vld [vmem:[#allocation5 + $0x588] sm:$0xff]
        %v547 = vld [vmem:[#allocation5 + $0x590] sm:$0xff]
        %v548 = vld [vmem:[#allocation5 + $0x598] sm:$0xff]
        %v549 = vld [vmem:[#allocation5 + $0x5a0] sm:$0xff]
        %v550 = vld [vmem:[#allocation5 + $0x5a8] sm:$0xff]
        %v551 = vld [vmem:[#allocation5 + $0x5b0] sm:$0xff]
        %v552 = vld [vmem:[#allocation5 + $0x5b8] sm:$0xff]
        %v553 = vld [vmem:[#allocation5 + $0x5c0] sm:$0xff]
        %v554 = vld [vmem:[#allocation5 + $0x5c8] sm:$0xff]
        %v555 = vld [vmem:[#allocation5 + $0x5d0] sm:$0xff]
        %v556 = vld [vmem:[#allocation5 + $0x5d8] sm:$0xff]
        %v557 = vld [vmem:[#allocation5 + $0x5e0] sm:$0xff]
        %v558 = vld [vmem:[#allocation5 + $0x5e8] sm:$0xff]
        %v559 = vld [vmem:[#allocation5 + $0x5f0] sm:$0xff]
        %v560 = vld [vmem:[#allocation5 + $0x5f8] sm:$0xff]
        %v561 = vld [vmem:[#allocation5 + $0x600] sm:$0xff]
        %v562 = vld [vmem:[#allocation5 + $0x608] sm:$0xff]
        %v563 = vld [vmem:[#allocation5 + $0x610] sm:$0xff]
        %v564 = vld [vmem:[#allocation5 + $0x618] sm:$0xff]
        %v565 = vld [vmem:[#allocation5 + $0x620] sm:$0xff]
        %v566 = vld [vmem:[#allocation5 + $0x628] sm:$0xff]
        %v567 = vld [vmem:[#allocation5 + $0x630] sm:$0xff]
        %v568 = vld [vmem:[#allocation5 + $0x638] sm:$0xff]
        %v569 = vld [vmem:[#allocation5 + $0x640] sm:$0xff]
        %v570 = vld [vmem:[#allocation5 + $0x648] sm:$0xff]
        %v571 = vld [vmem:[#allocation5 + $0x650] sm:$0xff]
        %v572 = vld [vmem:[#allocation5 + $0x658] sm:$0xff]
        %v573 = vld [vmem:[#allocation5 + $0x660] sm:$0xff]
        %v574 = vld [vmem:[#allocation5 + $0x668] sm:$0xff]
        %v575 = vld [vmem:[#allocation5 + $0x670] sm:$0xff]
        %v576 = vld [vmem:[#allocation5 + $0x678] sm:$0xff]
        %v577 = vld [vmem:[#allocation5 + $0x680] sm:$0xff]
        %v578 = vld [vmem:[#allocation5 + $0x688] sm:$0xff]
        %v579 = vld [vmem:[#allocation5 + $0x690] sm:$0xff]
        %v580 = vld [vmem:[#allocation5 + $0x698] sm:$0xff]
        %v581 = vld [vmem:[#allocation5 + $0x6a0] sm:$0xff]
        %v582 = vld [vmem:[#allocation5 + $0x6a8] sm:$0xff]
        %v583 = vld [vmem:[#allocation5 + $0x6b0] sm:$0xff]
        %v584 = vld [vmem:[#allocation5 + $0x6b8] sm:$0xff]
        %v585 = vld [vmem:[#allocation5 + $0x6c0] sm:$0xff]
        %v586 = vld [vmem:[#allocation5 + $0x6c8] sm:$0xff]
        %v587 = vld [vmem:[#allocation5 + $0x6d0] sm:$0xff]
        %v588 = vld [vmem:[#allocation5 + $0x6d8] sm:$0xff]
        %v589 = vld [vmem:[#allocation5 + $0x6e0] sm:$0xff]
        %v590 = vld [vmem:[#allocation5 + $0x6e8] sm:$0xff]
        %v591 = vld [vmem:[#allocation5 + $0x6f0] sm:$0xff]
        %v592 = vld [vmem:[#allocation5 + $0x6f8] sm:$0xff]
        %v593 = vld [vmem:[#allocation5 + $0x700] sm:$0xff]
        %v594 = vld [vmem:[#allocation5 + $0x708] sm:$0xff]
        %v595 = vld [vmem:[#allocation5 + $0x710] sm:$0xff]
        %v596 = vld [vmem:[#allocation5 + $0x718] sm:$0xff]
        %v597 = vld [vmem:[#allocation5 + $0x720] sm:$0xff]
        %v598 = vld [vmem:[#allocation5 + $0x728] sm:$0xff]
        %v599 = vld [vmem:[#allocation5 + $0x730] sm:$0xff]
        %v600 = vld [vmem:[#allocation5 + $0x738] sm:$0xff]
        %v601 = vld [vmem:[#allocation5 + $0x740] sm:$0xff]
        %v602 = vld [vmem:[#allocation5 + $0x748] sm:$0xff]
        %v603 = vld [vmem:[#allocation5 + $0x750] sm:$0xff]
        %v604 = vld [vmem:[#allocation5 + $0x758] sm:$0xff]
        %v605 = vld [vmem:[#allocation5 + $0x760] sm:$0xff]
        %v606 = vld [vmem:[#allocation5 + $0x768] sm:$0xff]
        %v607 = vld [vmem:[#allocation5 + $0x770] sm:$0xff]
        %v608 = vld [vmem:[#allocation5 + $0x778] sm:$0xff]
        %v609 = vld [vmem:[#allocation5 + $0x780] sm:$0xff]
        %v610 = vld [vmem:[#allocation5 + $0x788] sm:$0xff]
        %v611 = vld [vmem:[#allocation5 + $0x790] sm:$0xff]
        %v612 = vld [vmem:[#allocation5 + $0x798] sm:$0xff]
        %v613 = vld [vmem:[#allocation5 + $0x7a0] sm:$0xff]
        %v614 = vld [vmem:[#allocation5 + $0x7a8] sm:$0xff]
        %v615 = vld [vmem:[#allocation5 + $0x7b0] sm:$0xff]
        %v616 = vld [vmem:[#allocation5 + $0x7b8] sm:$0xff]
        %v617 = vld [vmem:[#allocation5 + $0x7c0] sm:$0xff]
        %v618 = vld [vmem:[#allocation5 + $0x7c8] sm:$0xff]
        %v619 = vld [vmem:[#allocation5 + $0x7d0] sm:$0xff]
        %v620 = vld [vmem:[#allocation5 + $0x7d8] sm:$0xff]
        %v621 = vld [vmem:[#allocation5 + $0x7e0] sm:$0xff]
        %v622 = vld [vmem:[#allocation5 + $0x7e8] sm:$0xff]
        %v623 = vld [vmem:[#allocation5 + $0x7f0] sm:$0xff]
        %v624 = vld [vmem:[#allocation5 + $0x7f8] sm:$0xff]
        %v625 = vld [vmem:[%s2] sm:$0xf]
        %v627 = vlaneseq
        %v628 = vshrl.u32 %v627, 7
        %v629 = vsub.s32 0, %v628
        %v630 = vrot.slane %v625, %v629
        %v631 = vlaneseq
        %v632 = vshrl.u32 %v631, 7
        %v633 = vsub.s32 1, %v632
        %v634 = vrot.slane %v625, %v633
        %v635 = vlaneseq
        %v636 = vshrl.u32 %v635, 7
        %v637 = vsub.s32 2, %v636
        %v638 = vrot.slane %v625, %v637
        %v639 = vlaneseq
        %v640 = vshrl.u32 %v639, 7
        %v641 = vsub.s32 3, %v640
        %v642 = vrot.slane %v625, %v641
        %v903 = vunpack.c.l.b16 %v369
        %v904 = vunpack.c.h.b16 %v369
        %v905 = vunpack.c.l.b16 %v370
        %v906 = vunpack.c.h.b16 %v370
        %v907 = vunpack.c.l.b16 %v371
        %v908 = vunpack.c.h.b16 %v371
        %v909 = vunpack.c.l.b16 %v372
        %v910 = vunpack.c.h.b16 %v372
        %v911 = vunpack.c.l.b16 %v373
        %v912 = vunpack.c.h.b16 %v373
        %v913 = vunpack.c.l.b16 %v374
        %v914 = vunpack.c.h.b16 %v374
        %v915 = vunpack.c.l.b16 %v375
        %v916 = vunpack.c.h.b16 %v375
        %v917 = vunpack.c.l.b16 %v376
        %v918 = vunpack.c.h.b16 %v376
        %v919 = vunpack.c.l.b16 %v377
        %v920 = vunpack.c.h.b16 %v377
        %v921 = vunpack.c.l.b16 %v378
        %v922 = vunpack.c.h.b16 %v378
        %v923 = vunpack.c.l.b16 %v379
        %v924 = vunpack.c.h.b16 %v379
        %v925 = vunpack.c.l.b16 %v380
        %v926 = vunpack.c.h.b16 %v380
        %v927 = vunpack.c.l.b16 %v381
        %v928 = vunpack.c.h.b16 %v381
        %v929 = vunpack.c.l.b16 %v382
        %v930 = vunpack.c.h.b16 %v382
        %v931 = vunpack.c.l.b16 %v383
        %v932 = vunpack.c.h.b16 %v383
        %v933 = vunpack.c.l.b16 %v384
        %v934 = vunpack.c.h.b16 %v384
        %v935 = vunpack.c.l.b16 %v385
        %v936 = vunpack.c.h.b16 %v385
        %v937 = vunpack.c.l.b16 %v386
        %v938 = vunpack.c.h.b16 %v386
        %v939 = vunpack.c.l.b16 %v387
        %v940 = vunpack.c.h.b16 %v387
        %v941 = vunpack.c.l.b16 %v388
        %v942 = vunpack.c.h.b16 %v388
        %v943 = vunpack.c.l.b16 %v389
        %v944 = vunpack.c.h.b16 %v389
        %v945 = vunpack.c.l.b16 %v390
        %v946 = vunpack.c.h.b16 %v390
        %v947 = vunpack.c.l.b16 %v391
        %v948 = vunpack.c.h.b16 %v391
        %v949 = vunpack.c.l.b16 %v392
        %v950 = vunpack.c.h.b16 %v392
        %v951 = vunpack.c.l.b16 %v393
        %v952 = vunpack.c.h.b16 %v393
        %v953 = vunpack.c.l.b16 %v394
        %v954 = vunpack.c.h.b16 %v394
        %v955 = vunpack.c.l.b16 %v395
        %v956 = vunpack.c.h.b16 %v395
        %v957 = vunpack.c.l.b16 %v396
        %v958 = vunpack.c.h.b16 %v396
        %v959 = vunpack.c.l.b16 %v397
        %v960 = vunpack.c.h.b16 %v397
        %v961 = vunpack.c.l.b16 %v398
        %v962 = vunpack.c.h.b16 %v398
        %v963 = vunpack.c.l.b16 %v399
        %v964 = vunpack.c.h.b16 %v399
        %v965 = vunpack.c.l.b16 %v400
        %v966 = vunpack.c.h.b16 %v400
        %v967 = vunpack.c.l.b16 %v401
        %v968 = vunpack.c.h.b16 %v401
        %v969 = vunpack.c.l.b16 %v402
        %v970 = vunpack.c.h.b16 %v402
        %v971 = vunpack.c.l.b16 %v403
        %v972 = vunpack.c.h.b16 %v403
        %v973 = vunpack.c.l.b16 %v404
        %v974 = vunpack.c.h.b16 %v404
        %v975 = vunpack.c.l.b16 %v405
        %v976 = vunpack.c.h.b16 %v405
        %v977 = vunpack.c.l.b16 %v406
        %v978 = vunpack.c.h.b16 %v406
        %v979 = vunpack.c.l.b16 %v407
        %v980 = vunpack.c.h.b16 %v407
        %v981 = vunpack.c.l.b16 %v408
        %v982 = vunpack.c.h.b16 %v408
        %v983 = vunpack.c.l.b16 %v409
        %v984 = vunpack.c.h.b16 %v409
        %v985 = vunpack.c.l.b16 %v410
        %v986 = vunpack.c.h.b16 %v410
        %v987 = vunpack.c.l.b16 %v411
        %v988 = vunpack.c.h.b16 %v411
        %v989 = vunpack.c.l.b16 %v412
        %v990 = vunpack.c.h.b16 %v412
        %v991 = vunpack.c.l.b16 %v413
        %v992 = vunpack.c.h.b16 %v413
        %v993 = vunpack.c.l.b16 %v414
        %v994 = vunpack.c.h.b16 %v414
        %v995 = vunpack.c.l.b16 %v415
        %v996 = vunpack.c.h.b16 %v415
        %v997 = vunpack.c.l.b16 %v416
        %v998 = vunpack.c.h.b16 %v416
        %v999 = vunpack.c.l.b16 %v417
        %v1000 = vunpack.c.h.b16 %v417
        %v1001 = vunpack.c.l.b16 %v418
        %v1002 = vunpack.c.h.b16 %v418
        %v1003 = vunpack.c.l.b16 %v419
        %v1004 = vunpack.c.h.b16 %v419
        %v1005 = vunpack.c.l.b16 %v420
        %v1006 = vunpack.c.h.b16 %v420
        %v1007 = vunpack.c.l.b16 %v421
        %v1008 = vunpack.c.h.b16 %v421
        %v1009 = vunpack.c.l.b16 %v422
        %v1010 = vunpack.c.h.b16 %v422
        %v1011 = vunpack.c.l.b16 %v423
        %v1012 = vunpack.c.h.b16 %v423
        %v1013 = vunpack.c.l.b16 %v424
        %v1014 = vunpack.c.h.b16 %v424
        %v1015 = vunpack.c.l.b16 %v425
        %v1016 = vunpack.c.h.b16 %v425
        %v1017 = vunpack.c.l.b16 %v426
        %v1018 = vunpack.c.h.b16 %v426
        %v1019 = vunpack.c.l.b16 %v427
        %v1020 = vunpack.c.h.b16 %v427
        %v1021 = vunpack.c.l.b16 %v428
        %v1022 = vunpack.c.h.b16 %v428
        %v1023 = vunpack.c.l.b16 %v429
        %v1024 = vunpack.c.h.b16 %v429
        %v1025 = vunpack.c.l.b16 %v430
        %v1026 = vunpack.c.h.b16 %v430
        %v1027 = vunpack.c.l.b16 %v431
        %v1028 = vunpack.c.h.b16 %v431
        %v1029 = vunpack.c.l.b16 %v432
        %v1030 = vunpack.c.h.b16 %v432
        %v1031 = vunpack.c.l.b16 %v433
        %v1032 = vunpack.c.h.b16 %v433
        %v1033 = vunpack.c.l.b16 %v434
        %v1034 = vunpack.c.h.b16 %v434
        %v1035 = vunpack.c.l.b16 %v435
        %v1036 = vunpack.c.h.b16 %v435
        %v1037 = vunpack.c.l.b16 %v436
        %v1038 = vunpack.c.h.b16 %v436
        %v1039 = vunpack.c.l.b16 %v437
        %v1040 = vunpack.c.h.b16 %v437
        %v1041 = vunpack.c.l.b16 %v438
        %v1042 = vunpack.c.h.b16 %v438
        %v1043 = vunpack.c.l.b16 %v439
        %v1044 = vunpack.c.h.b16 %v439
        %v1045 = vunpack.c.l.b16 %v440
        %v1046 = vunpack.c.h.b16 %v440
        %v1047 = vunpack.c.l.b16 %v441
        %v1048 = vunpack.c.h.b16 %v441
        %v1049 = vunpack.c.l.b16 %v442
        %v1050 = vunpack.c.h.b16 %v442
        %v1051 = vunpack.c.l.b16 %v443
        %v1052 = vunpack.c.h.b16 %v443
        %v1053 = vunpack.c.l.b16 %v444
        %v1054 = vunpack.c.h.b16 %v444
        %v1055 = vunpack.c.l.b16 %v445
        %v1056 = vunpack.c.h.b16 %v445
        %v1057 = vunpack.c.l.b16 %v446
        %v1058 = vunpack.c.h.b16 %v446
        %v1059 = vunpack.c.l.b16 %v447
        %v1060 = vunpack.c.h.b16 %v447
        %v1061 = vunpack.c.l.b16 %v448
        %v1062 = vunpack.c.h.b16 %v448
        %v1063 = vunpack.c.l.b16 %v449
        %v1064 = vunpack.c.h.b16 %v449
        %v1065 = vunpack.c.l.b16 %v450
        %v1066 = vunpack.c.h.b16 %v450
        %v1067 = vunpack.c.l.b16 %v451
        %v1068 = vunpack.c.h.b16 %v451
        %v1069 = vunpack.c.l.b16 %v452
        %v1070 = vunpack.c.h.b16 %v452
        %v1071 = vunpack.c.l.b16 %v453
        %v1072 = vunpack.c.h.b16 %v453
        %v1073 = vunpack.c.l.b16 %v454
        %v1074 = vunpack.c.h.b16 %v454
        %v1075 = vunpack.c.l.b16 %v455
        %v1076 = vunpack.c.h.b16 %v455
        %v1077 = vunpack.c.l.b16 %v456
        %v1078 = vunpack.c.h.b16 %v456
        %v1079 = vunpack.c.l.b16 %v457
        %v1080 = vunpack.c.h.b16 %v457
        %v1081 = vunpack.c.l.b16 %v458
        %v1082 = vunpack.c.h.b16 %v458
        %v1083 = vunpack.c.l.b16 %v459
        %v1084 = vunpack.c.h.b16 %v459
        %v1085 = vunpack.c.l.b16 %v460
        %v1086 = vunpack.c.h.b16 %v460
        %v1087 = vunpack.c.l.b16 %v461
        %v1088 = vunpack.c.h.b16 %v461
        %v1089 = vunpack.c.l.b16 %v462
        %v1090 = vunpack.c.h.b16 %v462
        %v1091 = vunpack.c.l.b16 %v463
        %v1092 = vunpack.c.h.b16 %v463
        %v1093 = vunpack.c.l.b16 %v464
        %v1094 = vunpack.c.h.b16 %v464
        %v1095 = vunpack.c.l.b16 %v465
        %v1096 = vunpack.c.h.b16 %v465
        %v1097 = vunpack.c.l.b16 %v466
        %v1098 = vunpack.c.h.b16 %v466
        %v1099 = vunpack.c.l.b16 %v467
        %v1100 = vunpack.c.h.b16 %v467
        %v1101 = vunpack.c.l.b16 %v468
        %v1102 = vunpack.c.h.b16 %v468
        %v1103 = vunpack.c.l.b16 %v469
        %v1104 = vunpack.c.h.b16 %v469
        %v1105 = vunpack.c.l.b16 %v470
        %v1106 = vunpack.c.h.b16 %v470
        %v1107 = vunpack.c.l.b16 %v471
        %v1108 = vunpack.c.h.b16 %v471
        %v1109 = vunpack.c.l.b16 %v472
        %v1110 = vunpack.c.h.b16 %v472
        %v1111 = vunpack.c.l.b16 %v473
        %v1112 = vunpack.c.h.b16 %v473
        %v1113 = vunpack.c.l.b16 %v474
        %v1114 = vunpack.c.h.b16 %v474
        %v1115 = vunpack.c.l.b16 %v475
        %v1116 = vunpack.c.h.b16 %v475
        %v1117 = vunpack.c.l.b16 %v476
        %v1118 = vunpack.c.h.b16 %v476
        %v1119 = vunpack.c.l.b16 %v477
        %v1120 = vunpack.c.h.b16 %v477
        %v1121 = vunpack.c.l.b16 %v478
        %v1122 = vunpack.c.h.b16 %v478
        %v1123 = vunpack.c.l.b16 %v479
        %v1124 = vunpack.c.h.b16 %v479
        %v1125 = vunpack.c.l.b16 %v480
        %v1126 = vunpack.c.h.b16 %v480
        %v1127 = vunpack.c.l.b16 %v481
        %v1128 = vunpack.c.h.b16 %v481
        %v1129 = vunpack.c.l.b16 %v482
        %v1130 = vunpack.c.h.b16 %v482
        %v1131 = vunpack.c.l.b16 %v483
        %v1132 = vunpack.c.h.b16 %v483
        %v1133 = vunpack.c.l.b16 %v484
        %v1134 = vunpack.c.h.b16 %v484
        %v1135 = vunpack.c.l.b16 %v485
        %v1136 = vunpack.c.h.b16 %v485
        %v1137 = vunpack.c.l.b16 %v486
        %v1138 = vunpack.c.h.b16 %v486
        %v1139 = vunpack.c.l.b16 %v487
        %v1140 = vunpack.c.h.b16 %v487
        %v1141 = vunpack.c.l.b16 %v488
        %v1142 = vunpack.c.h.b16 %v488
        %v1143 = vunpack.c.l.b16 %v489
        %v1144 = vunpack.c.h.b16 %v489
        %v1145 = vunpack.c.l.b16 %v490
        %v1146 = vunpack.c.h.b16 %v490
        %v1147 = vunpack.c.l.b16 %v491
        %v1148 = vunpack.c.h.b16 %v491
        %v1149 = vunpack.c.l.b16 %v492
        %v1150 = vunpack.c.h.b16 %v492
        %v1151 = vunpack.c.l.b16 %v493
        %v1152 = vunpack.c.h.b16 %v493
        %v1153 = vunpack.c.l.b16 %v494
        %v1154 = vunpack.c.h.b16 %v494
        %v1155 = vunpack.c.l.b16 %v495
        %v1156 = vunpack.c.h.b16 %v495
        %v1157 = vunpack.c.l.b16 %v496
        %v1158 = vunpack.c.h.b16 %v496
        %v1159 = vunpack.c.l.b16 %v497
        %v1160 = vunpack.c.h.b16 %v497
        %v1161 = vunpack.c.l.b16 %v498
        %v1162 = vunpack.c.h.b16 %v498
        %v1163 = vunpack.c.l.b16 %v499
        %v1164 = vunpack.c.h.b16 %v499
        %v1165 = vunpack.c.l.b16 %v500
        %v1166 = vunpack.c.h.b16 %v500
        %v1167 = vunpack.c.l.b16 %v501
        %v1168 = vunpack.c.h.b16 %v501
        %v1169 = vunpack.c.l.b16 %v502
        %v1170 = vunpack.c.h.b16 %v502
        %v1171 = vunpack.c.l.b16 %v503
        %v1172 = vunpack.c.h.b16 %v503
        %v1173 = vunpack.c.l.b16 %v504
        %v1174 = vunpack.c.h.b16 %v504
        %v1175 = vunpack.c.l.b16 %v505
        %v1176 = vunpack.c.h.b16 %v505
        %v1177 = vunpack.c.l.b16 %v506
        %v1178 = vunpack.c.h.b16 %v506
        %v1179 = vunpack.c.l.b16 %v507
        %v1180 = vunpack.c.h.b16 %v507
        %v1181 = vunpack.c.l.b16 %v508
        %v1182 = vunpack.c.h.b16 %v508
        %v1183 = vunpack.c.l.b16 %v509
        %v1184 = vunpack.c.h.b16 %v509
        %v1185 = vunpack.c.l.b16 %v510
        %v1186 = vunpack.c.h.b16 %v510
        %v1187 = vunpack.c.l.b16 %v511
        %v1188 = vunpack.c.h.b16 %v511
        %v1189 = vunpack.c.l.b16 %v512
        %v1190 = vunpack.c.h.b16 %v512
        %v1191 = vunpack.c.l.b16 %v513
        %v1192 = vunpack.c.h.b16 %v513
        %v1193 = vunpack.c.l.b16 %v514
        %v1194 = vunpack.c.h.b16 %v514
        %v1195 = vunpack.c.l.b16 %v515
        %v1196 = vunpack.c.h.b16 %v515
        %v1197 = vunpack.c.l.b16 %v516
        %v1198 = vunpack.c.h.b16 %v516
        %v1199 = vunpack.c.l.b16 %v517
        %v1200 = vunpack.c.h.b16 %v517
        %v1201 = vunpack.c.l.b16 %v518
        %v1202 = vunpack.c.h.b16 %v518
        %v1203 = vunpack.c.l.b16 %v519
        %v1204 = vunpack.c.h.b16 %v519
        %v1205 = vunpack.c.l.b16 %v520
        %v1206 = vunpack.c.h.b16 %v520
        %v1207 = vunpack.c.l.b16 %v521
        %v1208 = vunpack.c.h.b16 %v521
        %v1209 = vunpack.c.l.b16 %v522
        %v1210 = vunpack.c.h.b16 %v522
        %v1211 = vunpack.c.l.b16 %v523
        %v1212 = vunpack.c.h.b16 %v523
        %v1213 = vunpack.c.l.b16 %v524
        %v1214 = vunpack.c.h.b16 %v524
        %v1215 = vunpack.c.l.b16 %v525
        %v1216 = vunpack.c.h.b16 %v525
        %v1217 = vunpack.c.l.b16 %v526
        %v1218 = vunpack.c.h.b16 %v526
        %v1219 = vunpack.c.l.b16 %v527
        %v1220 = vunpack.c.h.b16 %v527
        %v1221 = vunpack.c.l.b16 %v528
        %v1222 = vunpack.c.h.b16 %v528
        %v1223 = vunpack.c.l.b16 %v529
        %v1224 = vunpack.c.h.b16 %v529
        %v1225 = vunpack.c.l.b16 %v530
        %v1226 = vunpack.c.h.b16 %v530
        %v1227 = vunpack.c.l.b16 %v531
        %v1228 = vunpack.c.h.b16 %v531
        %v1229 = vunpack.c.l.b16 %v532
        %v1230 = vunpack.c.h.b16 %v532
        %v1231 = vunpack.c.l.b16 %v533
        %v1232 = vunpack.c.h.b16 %v533
        %v1233 = vunpack.c.l.b16 %v534
        %v1234 = vunpack.c.h.b16 %v534
        %v1235 = vunpack.c.l.b16 %v535
        %v1236 = vunpack.c.h.b16 %v535
        %v1237 = vunpack.c.l.b16 %v536
        %v1238 = vunpack.c.h.b16 %v536
        %v1239 = vunpack.c.l.b16 %v537
        %v1240 = vunpack.c.h.b16 %v537
        %v1241 = vunpack.c.l.b16 %v538
        %v1242 = vunpack.c.h.b16 %v538
        %v1243 = vunpack.c.l.b16 %v539
        %v1244 = vunpack.c.h.b16 %v539
        %v1245 = vunpack.c.l.b16 %v540
        %v1246 = vunpack.c.h.b16 %v540
        %v1247 = vunpack.c.l.b16 %v541
        %v1248 = vunpack.c.h.b16 %v541
        %v1249 = vunpack.c.l.b16 %v542
        %v1250 = vunpack.c.h.b16 %v542
        %v1251 = vunpack.c.l.b16 %v543
        %v1252 = vunpack.c.h.b16 %v543
        %v1253 = vunpack.c.l.b16 %v544
        %v1254 = vunpack.c.h.b16 %v544
        %v1255 = vunpack.c.l.b16 %v545
        %v1256 = vunpack.c.h.b16 %v545
        %v1257 = vunpack.c.l.b16 %v546
        %v1258 = vunpack.c.h.b16 %v546
        %v1259 = vunpack.c.l.b16 %v547
        %v1260 = vunpack.c.h.b16 %v547
        %v1261 = vunpack.c.l.b16 %v548
        %v1262 = vunpack.c.h.b16 %v548
        %v1263 = vunpack.c.l.b16 %v549
        %v1264 = vunpack.c.h.b16 %v549
        %v1265 = vunpack.c.l.b16 %v550
        %v1266 = vunpack.c.h.b16 %v550
        %v1267 = vunpack.c.l.b16 %v551
        %v1268 = vunpack.c.h.b16 %v551
        %v1269 = vunpack.c.l.b16 %v552
        %v1270 = vunpack.c.h.b16 %v552
        %v1271 = vunpack.c.l.b16 %v553
        %v1272 = vunpack.c.h.b16 %v553
        %v1273 = vunpack.c.l.b16 %v554
        %v1274 = vunpack.c.h.b16 %v554
        %v1275 = vunpack.c.l.b16 %v555
        %v1276 = vunpack.c.h.b16 %v555
        %v1277 = vunpack.c.l.b16 %v556
        %v1278 = vunpack.c.h.b16 %v556
        %v1279 = vunpack.c.l.b16 %v557
        %v1280 = vunpack.c.h.b16 %v557
        %v1281 = vunpack.c.l.b16 %v558
        %v1282 = vunpack.c.h.b16 %v558
        %v1283 = vunpack.c.l.b16 %v559
        %v1284 = vunpack.c.h.b16 %v559
        %v1285 = vunpack.c.l.b16 %v560
        %v1286 = vunpack.c.h.b16 %v560
        %v1287 = vunpack.c.l.b16 %v561
        %v1288 = vunpack.c.h.b16 %v561
        %v1289 = vunpack.c.l.b16 %v562
        %v1290 = vunpack.c.h.b16 %v562
        %v1291 = vunpack.c.l.b16 %v563
        %v1292 = vunpack.c.h.b16 %v563
        %v1293 = vunpack.c.l.b16 %v564
        %v1294 = vunpack.c.h.b16 %v564
        %v1295 = vunpack.c.l.b16 %v565
        %v1296 = vunpack.c.h.b16 %v565
        %v1297 = vunpack.c.l.b16 %v566
        %v1298 = vunpack.c.h.b16 %v566
        %v1299 = vunpack.c.l.b16 %v567
        %v1300 = vunpack.c.h.b16 %v567
        %v1301 = vunpack.c.l.b16 %v568
        %v1302 = vunpack.c.h.b16 %v568
        %v1303 = vunpack.c.l.b16 %v569
        %v1304 = vunpack.c.h.b16 %v569
        %v1305 = vunpack.c.l.b16 %v570
        %v1306 = vunpack.c.h.b16 %v570
        %v1307 = vunpack.c.l.b16 %v571
        %v1308 = vunpack.c.h.b16 %v571
        %v1309 = vunpack.c.l.b16 %v572
        %v1310 = vunpack.c.h.b16 %v572
        %v1311 = vunpack.c.l.b16 %v573
        %v1312 = vunpack.c.h.b16 %v573
        %v1313 = vunpack.c.l.b16 %v574
        %v1314 = vunpack.c.h.b16 %v574
        %v1315 = vunpack.c.l.b16 %v575
        %v1316 = vunpack.c.h.b16 %v575
        %v1317 = vunpack.c.l.b16 %v576
        %v1318 = vunpack.c.h.b16 %v576
        %v1319 = vunpack.c.l.b16 %v577
        %v1320 = vunpack.c.h.b16 %v577
        %v1321 = vunpack.c.l.b16 %v578
        %v1322 = vunpack.c.h.b16 %v578
        %v1323 = vunpack.c.l.b16 %v579
        %v1324 = vunpack.c.h.b16 %v579
        %v1325 = vunpack.c.l.b16 %v580
        %v1326 = vunpack.c.h.b16 %v580
        %v1327 = vunpack.c.l.b16 %v581
        %v1328 = vunpack.c.h.b16 %v581
        %v1329 = vunpack.c.l.b16 %v582
        %v1330 = vunpack.c.h.b16 %v582
        %v1331 = vunpack.c.l.b16 %v583
        %v1332 = vunpack.c.h.b16 %v583
        %v1333 = vunpack.c.l.b16 %v584
        %v1334 = vunpack.c.h.b16 %v584
        %v1335 = vunpack.c.l.b16 %v585
        %v1336 = vunpack.c.h.b16 %v585
        %v1337 = vunpack.c.l.b16 %v586
        %v1338 = vunpack.c.h.b16 %v586
        %v1339 = vunpack.c.l.b16 %v587
        %v1340 = vunpack.c.h.b16 %v587
        %v1341 = vunpack.c.l.b16 %v588
        %v1342 = vunpack.c.h.b16 %v588
        %v1343 = vunpack.c.l.b16 %v589
        %v1344 = vunpack.c.h.b16 %v589
        %v1345 = vunpack.c.l.b16 %v590
        %v1346 = vunpack.c.h.b16 %v590
        %v1347 = vunpack.c.l.b16 %v591
        %v1348 = vunpack.c.h.b16 %v591
        %v1349 = vunpack.c.l.b16 %v592
        %v1350 = vunpack.c.h.b16 %v592
        %v1351 = vunpack.c.l.b16 %v593
        %v1352 = vunpack.c.h.b16 %v593
        %v1353 = vunpack.c.l.b16 %v594
        %v1354 = vunpack.c.h.b16 %v594
        %v1355 = vunpack.c.l.b16 %v595
        %v1356 = vunpack.c.h.b16 %v595
        %v1357 = vunpack.c.l.b16 %v596
        %v1358 = vunpack.c.h.b16 %v596
        %v1359 = vunpack.c.l.b16 %v597
        %v1360 = vunpack.c.h.b16 %v597
        %v1361 = vunpack.c.l.b16 %v598
        %v1362 = vunpack.c.h.b16 %v598
        %v1363 = vunpack.c.l.b16 %v599
        %v1364 = vunpack.c.h.b16 %v599
        %v1365 = vunpack.c.l.b16 %v600
        %v1366 = vunpack.c.h.b16 %v600
        %v1367 = vunpack.c.l.b16 %v601
        %v1368 = vunpack.c.h.b16 %v601
        %v1369 = vunpack.c.l.b16 %v602
        %v1370 = vunpack.c.h.b16 %v602
        %v1371 = vunpack.c.l.b16 %v603
        %v1372 = vunpack.c.h.b16 %v603
        %v1373 = vunpack.c.l.b16 %v604
        %v1374 = vunpack.c.h.b16 %v604
        %v1375 = vunpack.c.l.b16 %v605
        %v1376 = vunpack.c.h.b16 %v605
        %v1377 = vunpack.c.l.b16 %v606
        %v1378 = vunpack.c.h.b16 %v606
        %v1379 = vunpack.c.l.b16 %v607
        %v1380 = vunpack.c.h.b16 %v607
        %v1381 = vunpack.c.l.b16 %v608
        %v1382 = vunpack.c.h.b16 %v608
        %v1383 = vunpack.c.l.b16 %v609
        %v1384 = vunpack.c.h.b16 %v609
        %v1385 = vunpack.c.l.b16 %v610
        %v1386 = vunpack.c.h.b16 %v610
        %v1387 = vunpack.c.l.b16 %v611
        %v1388 = vunpack.c.h.b16 %v611
        %v1389 = vunpack.c.l.b16 %v612
        %v1390 = vunpack.c.h.b16 %v612
        %v1391 = vunpack.c.l.b16 %v613
        %v1392 = vunpack.c.h.b16 %v613
        %v1393 = vunpack.c.l.b16 %v614
        %v1394 = vunpack.c.h.b16 %v614
        %v1395 = vunpack.c.l.b16 %v615
        %v1396 = vunpack.c.h.b16 %v615
        %v1397 = vunpack.c.l.b16 %v616
        %v1398 = vunpack.c.h.b16 %v616
        %v1399 = vunpack.c.l.b16 %v617
        %v1400 = vunpack.c.h.b16 %v617
        %v1401 = vunpack.c.l.b16 %v618
        %v1402 = vunpack.c.h.b16 %v618
        %v1403 = vunpack.c.l.b16 %v619
        %v1404 = vunpack.c.h.b16 %v619
        %v1405 = vunpack.c.l.b16 %v620
        %v1406 = vunpack.c.h.b16 %v620
        %v1407 = vunpack.c.l.b16 %v621
        %v1408 = vunpack.c.h.b16 %v621
        %v1409 = vunpack.c.l.b16 %v622
        %v1410 = vunpack.c.h.b16 %v622
        %v1411 = vunpack.c.l.b16 %v623
        %v1412 = vunpack.c.h.b16 %v623
        %v1413 = vunpack.c.l.b16 %v624
        %v1414 = vunpack.c.h.b16 %v624
        %v1415 = vpack.c.b16 %v907, %v903
        %v1416 = vpack.c.b16 %v908, %v904
        %v1417 = vpack.c.b16 %v909, %v905
        %v1418 = vpack.c.b16 %v910, %v906
        %v1419 = vpack.c.b16 %v915, %v911
        %v1420 = vpack.c.b16 %v916, %v912
        %v1421 = vpack.c.b16 %v917, %v913
        %v1422 = vpack.c.b16 %v918, %v914
        %v1423 = vpack.c.b16 %v923, %v919
        %v1424 = vpack.c.b16 %v924, %v920
        %v1425 = vpack.c.b16 %v925, %v921
        %v1426 = vpack.c.b16 %v926, %v922
        %v1427 = vpack.c.b16 %v931, %v927
        %v1428 = vpack.c.b16 %v932, %v928
        %v1429 = vpack.c.b16 %v933, %v929
        %v1430 = vpack.c.b16 %v934, %v930
        %v1431 = vpack.c.b16 %v939, %v935
        %v1432 = vpack.c.b16 %v940, %v936
        %v1433 = vpack.c.b16 %v941, %v937
        %v1434 = vpack.c.b16 %v942, %v938
        %v1435 = vpack.c.b16 %v947, %v943
        %v1436 = vpack.c.b16 %v948, %v944
        %v1437 = vpack.c.b16 %v949, %v945
        %v1438 = vpack.c.b16 %v950, %v946
        %v1439 = vpack.c.b16 %v955, %v951
        %v1440 = vpack.c.b16 %v956, %v952
        %v1441 = vpack.c.b16 %v957, %v953
        %v1442 = vpack.c.b16 %v958, %v954
        %v1443 = vpack.c.b16 %v963, %v959
        %v1444 = vpack.c.b16 %v964, %v960
        %v1445 = vpack.c.b16 %v965, %v961
        %v1446 = vpack.c.b16 %v966, %v962
        %v1447 = vpack.c.b16 %v971, %v967
        %v1448 = vpack.c.b16 %v972, %v968
        %v1449 = vpack.c.b16 %v973, %v969
        %v1450 = vpack.c.b16 %v974, %v970
        %v1451 = vpack.c.b16 %v979, %v975
        %v1452 = vpack.c.b16 %v980, %v976
        %v1453 = vpack.c.b16 %v981, %v977
        %v1454 = vpack.c.b16 %v982, %v978
        %v1455 = vpack.c.b16 %v987, %v983
        %v1456 = vpack.c.b16 %v988, %v984
        %v1457 = vpack.c.b16 %v989, %v985
        %v1458 = vpack.c.b16 %v990, %v986
        %v1459 = vpack.c.b16 %v995, %v991
        %v1460 = vpack.c.b16 %v996, %v992
        %v1461 = vpack.c.b16 %v997, %v993
        %v1462 = vpack.c.b16 %v998, %v994
        %v1463 = vpack.c.b16 %v1003, %v999
        %v1464 = vpack.c.b16 %v1004, %v1000
        %v1465 = vpack.c.b16 %v1005, %v1001
        %v1466 = vpack.c.b16 %v1006, %v1002
        %v1467 = vpack.c.b16 %v1011, %v1007
        %v1468 = vpack.c.b16 %v1012, %v1008
        %v1469 = vpack.c.b16 %v1013, %v1009
        %v1470 = vpack.c.b16 %v1014, %v1010
        %v1471 = vpack.c.b16 %v1019, %v1015
        %v1472 = vpack.c.b16 %v1020, %v1016
        %v1473 = vpack.c.b16 %v1021, %v1017
        %v1474 = vpack.c.b16 %v1022, %v1018
        %v1475 = vpack.c.b16 %v1027, %v1023
        %v1476 = vpack.c.b16 %v1028, %v1024
        %v1477 = vpack.c.b16 %v1029, %v1025
        %v1478 = vpack.c.b16 %v1030, %v1026
        %v1479 = vpack.c.b16 %v1035, %v1031
        %v1480 = vpack.c.b16 %v1036, %v1032
        %v1481 = vpack.c.b16 %v1037, %v1033
        %v1482 = vpack.c.b16 %v1038, %v1034
        %v1483 = vpack.c.b16 %v1043, %v1039
        %v1484 = vpack.c.b16 %v1044, %v1040
        %v1485 = vpack.c.b16 %v1045, %v1041
        %v1486 = vpack.c.b16 %v1046, %v1042
        %v1487 = vpack.c.b16 %v1051, %v1047
        %v1488 = vpack.c.b16 %v1052, %v1048
        %v1489 = vpack.c.b16 %v1053, %v1049
        %v1490 = vpack.c.b16 %v1054, %v1050
        %v1491 = vpack.c.b16 %v1059, %v1055
        %v1492 = vpack.c.b16 %v1060, %v1056
        %v1493 = vpack.c.b16 %v1061, %v1057
        %v1494 = vpack.c.b16 %v1062, %v1058
        %v1495 = vpack.c.b16 %v1067, %v1063
        %v1496 = vpack.c.b16 %v1068, %v1064
        %v1497 = vpack.c.b16 %v1069, %v1065
        %v1498 = vpack.c.b16 %v1070, %v1066
        %v1499 = vpack.c.b16 %v1075, %v1071
        %v1500 = vpack.c.b16 %v1076, %v1072
        %v1501 = vpack.c.b16 %v1077, %v1073
        %v1502 = vpack.c.b16 %v1078, %v1074
        %v1503 = vpack.c.b16 %v1083, %v1079
        %v1504 = vpack.c.b16 %v1084, %v1080
        %v1505 = vpack.c.b16 %v1085, %v1081
        %v1506 = vpack.c.b16 %v1086, %v1082
        %v1507 = vpack.c.b16 %v1091, %v1087
        %v1508 = vpack.c.b16 %v1092, %v1088
        %v1509 = vpack.c.b16 %v1093, %v1089
        %v1510 = vpack.c.b16 %v1094, %v1090
        %v1511 = vpack.c.b16 %v1099, %v1095
        %v1512 = vpack.c.b16 %v1100, %v1096
        %v1513 = vpack.c.b16 %v1101, %v1097
        %v1514 = vpack.c.b16 %v1102, %v1098
        %v1515 = vpack.c.b16 %v1107, %v1103
        %v1516 = vpack.c.b16 %v1108, %v1104
        %v1517 = vpack.c.b16 %v1109, %v1105
        %v1518 = vpack.c.b16 %v1110, %v1106
        %v1519 = vpack.c.b16 %v1115, %v1111
        %v1520 = vpack.c.b16 %v1116, %v1112
        %v1521 = vpack.c.b16 %v1117, %v1113
        %v1522 = vpack.c.b16 %v1118, %v1114
        %v1523 = vpack.c.b16 %v1123, %v1119
        %v1524 = vpack.c.b16 %v1124, %v1120
        %v1525 = vpack.c.b16 %v1125, %v1121
        %v1526 = vpack.c.b16 %v1126, %v1122
        %v1527 = vpack.c.b16 %v1131, %v1127
        %v1528 = vpack.c.b16 %v1132, %v1128
        %v1529 = vpack.c.b16 %v1133, %v1129
        %v1530 = vpack.c.b16 %v1134, %v1130
        %v1531 = vpack.c.b16 %v1139, %v1135
        %v1532 = vpack.c.b16 %v1140, %v1136
        %v1533 = vpack.c.b16 %v1141, %v1137
        %v1534 = vpack.c.b16 %v1142, %v1138
        %v1535 = vpack.c.b16 %v1147, %v1143
        %v1536 = vpack.c.b16 %v1148, %v1144
        %v1537 = vpack.c.b16 %v1149, %v1145
        %v1538 = vpack.c.b16 %v1150, %v1146
        %v1539 = vpack.c.b16 %v1155, %v1151
        %v1540 = vpack.c.b16 %v1156, %v1152
        %v1541 = vpack.c.b16 %v1157, %v1153
        %v1542 = vpack.c.b16 %v1158, %v1154
        %v1543 = vpack.c.b16 %v1163, %v1159
        %v1544 = vpack.c.b16 %v1164, %v1160
        %v1545 = vpack.c.b16 %v1165, %v1161
        %v1546 = vpack.c.b16 %v1166, %v1162
        %v1547 = vpack.c.b16 %v1171, %v1167
        %v1548 = vpack.c.b16 %v1172, %v1168
        %v1549 = vpack.c.b16 %v1173, %v1169
        %v1550 = vpack.c.b16 %v1174, %v1170
        %v1551 = vpack.c.b16 %v1179, %v1175
        %v1552 = vpack.c.b16 %v1180, %v1176
        %v1553 = vpack.c.b16 %v1181, %v1177
        %v1554 = vpack.c.b16 %v1182, %v1178
        %v1555 = vpack.c.b16 %v1187, %v1183
        %v1556 = vpack.c.b16 %v1188, %v1184
        %v1557 = vpack.c.b16 %v1189, %v1185
        %v1558 = vpack.c.b16 %v1190, %v1186
        %v1559 = vpack.c.b16 %v1195, %v1191
        %v1560 = vpack.c.b16 %v1196, %v1192
        %v1561 = vpack.c.b16 %v1197, %v1193
        %v1562 = vpack.c.b16 %v1198, %v1194
        %v1563 = vpack.c.b16 %v1203, %v1199
        %v1564 = vpack.c.b16 %v1204, %v1200
        %v1565 = vpack.c.b16 %v1205, %v1201
        %v1566 = vpack.c.b16 %v1206, %v1202
        %v1567 = vpack.c.b16 %v1211, %v1207
        %v1568 = vpack.c.b16 %v1212, %v1208
        %v1569 = vpack.c.b16 %v1213, %v1209
        %v1570 = vpack.c.b16 %v1214, %v1210
        %v1571 = vpack.c.b16 %v1219, %v1215
        %v1572 = vpack.c.b16 %v1220, %v1216
        %v1573 = vpack.c.b16 %v1221, %v1217
        %v1574 = vpack.c.b16 %v1222, %v1218
        %v1575 = vpack.c.b16 %v1227, %v1223
        %v1576 = vpack.c.b16 %v1228, %v1224
        %v1577 = vpack.c.b16 %v1229, %v1225
        %v1578 = vpack.c.b16 %v1230, %v1226
        %v1579 = vpack.c.b16 %v1235, %v1231
        %v1580 = vpack.c.b16 %v1236, %v1232
        %v1581 = vpack.c.b16 %v1237, %v1233
        %v1582 = vpack.c.b16 %v1238, %v1234
        %v1583 = vpack.c.b16 %v1243, %v1239
        %v1584 = vpack.c.b16 %v1244, %v1240
        %v1585 = vpack.c.b16 %v1245, %v1241
        %v1586 = vpack.c.b16 %v1246, %v1242
        %v1587 = vpack.c.b16 %v1251, %v1247
        %v1588 = vpack.c.b16 %v1252, %v1248
        %v1589 = vpack.c.b16 %v1253, %v1249
        %v1590 = vpack.c.b16 %v1254, %v1250
        %v1591 = vpack.c.b16 %v1259, %v1255
        %v1592 = vpack.c.b16 %v1260, %v1256
        %v1593 = vpack.c.b16 %v1261, %v1257
        %v1594 = vpack.c.b16 %v1262, %v1258
        %v1595 = vpack.c.b16 %v1267, %v1263
        %v1596 = vpack.c.b16 %v1268, %v1264
        %v1597 = vpack.c.b16 %v1269, %v1265
        %v1598 = vpack.c.b16 %v1270, %v1266
        %v1599 = vpack.c.b16 %v1275, %v1271
        %v1600 = vpack.c.b16 %v1276, %v1272
        %v1601 = vpack.c.b16 %v1277, %v1273
        %v1602 = vpack.c.b16 %v1278, %v1274
        %v1603 = vpack.c.b16 %v1283, %v1279
        %v1604 = vpack.c.b16 %v1284, %v1280
        %v1605 = vpack.c.b16 %v1285, %v1281
        %v1606 = vpack.c.b16 %v1286, %v1282
        %v1607 = vpack.c.b16 %v1291, %v1287
        %v1608 = vpack.c.b16 %v1292, %v1288
        %v1609 = vpack.c.b16 %v1293, %v1289
        %v1610 = vpack.c.b16 %v1294, %v1290
        %v1611 = vpack.c.b16 %v1299, %v1295
        %v1612 = vpack.c.b16 %v1300, %v1296
        %v1613 = vpack.c.b16 %v1301, %v1297
        %v1614 = vpack.c.b16 %v1302, %v1298
        %v1615 = vpack.c.b16 %v1307, %v1303
        %v1616 = vpack.c.b16 %v1308, %v1304
        %v1617 = vpack.c.b16 %v1309, %v1305
        %v1618 = vpack.c.b16 %v1310, %v1306
        %v1619 = vpack.c.b16 %v1315, %v1311
        %v1620 = vpack.c.b16 %v1316, %v1312
        %v1621 = vpack.c.b16 %v1317, %v1313
        %v1622 = vpack.c.b16 %v1318, %v1314
        %v1623 = vpack.c.b16 %v1323, %v1319
        %v1624 = vpack.c.b16 %v1324, %v1320
        %v1625 = vpack.c.b16 %v1325, %v1321
        %v1626 = vpack.c.b16 %v1326, %v1322
        %v1627 = vpack.c.b16 %v1331, %v1327
        %v1628 = vpack.c.b16 %v1332, %v1328
        %v1629 = vpack.c.b16 %v1333, %v1329
        %v1630 = vpack.c.b16 %v1334, %v1330
        %v1631 = vpack.c.b16 %v1339, %v1335
        %v1632 = vpack.c.b16 %v1340, %v1336
        %v1633 = vpack.c.b16 %v1341, %v1337
        %v1634 = vpack.c.b16 %v1342, %v1338
        %v1635 = vpack.c.b16 %v1347, %v1343
        %v1636 = vpack.c.b16 %v1348, %v1344
        %v1637 = vpack.c.b16 %v1349, %v1345
        %v1638 = vpack.c.b16 %v1350, %v1346
        %v1639 = vpack.c.b16 %v1355, %v1351
        %v1640 = vpack.c.b16 %v1356, %v1352
        %v1641 = vpack.c.b16 %v1357, %v1353
        %v1642 = vpack.c.b16 %v1358, %v1354
        %v1643 = vpack.c.b16 %v1363, %v1359
        %v1644 = vpack.c.b16 %v1364, %v1360
        %v1645 = vpack.c.b16 %v1365, %v1361
        %v1646 = vpack.c.b16 %v1366, %v1362
        %v1647 = vpack.c.b16 %v1371, %v1367
        %v1648 = vpack.c.b16 %v1372, %v1368
        %v1649 = vpack.c.b16 %v1373, %v1369
        %v1650 = vpack.c.b16 %v1374, %v1370
        %v1651 = vpack.c.b16 %v1379, %v1375
        %v1652 = vpack.c.b16 %v1380, %v1376
        %v1653 = vpack.c.b16 %v1381, %v1377
        %v1654 = vpack.c.b16 %v1382, %v1378
        %v1655 = vpack.c.b16 %v1387, %v1383
        %v1656 = vpack.c.b16 %v1388, %v1384
        %v1657 = vpack.c.b16 %v1389, %v1385
        %v1658 = vpack.c.b16 %v1390, %v1386
        %v1659 = vpack.c.b16 %v1395, %v1391
        %v1660 = vpack.c.b16 %v1396, %v1392
        %v1661 = vpack.c.b16 %v1397, %v1393
        %v1662 = vpack.c.b16 %v1398, %v1394
        %v1663 = vpack.c.b16 %v1403, %v1399
        %v1664 = vpack.c.b16 %v1404, %v1400
        %v1665 = vpack.c.b16 %v1405, %v1401
        %v1666 = vpack.c.b16 %v1406, %v1402
        %v1667 = vpack.c.b16 %v1411, %v1407
        %v1668 = vpack.c.b16 %v1412, %v1408
        %v1669 = vpack.c.b16 %v1413, %v1409
        %v1670 = vpack.c.b16 %v1414, %v1410
        %1927 = vmatprep.subr.bf16.mxu0 %v1416
        %1928 = vmatpush1.bf16.msra.mxu0 %v1415
        %1929 = vmatprep.subr.bf16.mxu0 %v1420
        %1930 = vmatpush1.bf16.msra.mxu0 %v1419
        %1931 = vmatprep.subr.bf16.mxu0 %v1424
        %1932 = vmatpush1.bf16.msra.mxu0 %v1423
        %1933 = vmatprep.subr.bf16.mxu0 %v1428
        %1934 = vmatpush1.bf16.msra.mxu0 %v1427
        %1935 = vmatprep.subr.bf16.mxu0 %v1432
        %1936 = vmatpush1.bf16.msra.mxu0 %v1431
        %1937 = vmatprep.subr.bf16.mxu0 %v1436
        %1938 = vmatpush1.bf16.msra.mxu0 %v1435
        %1939 = vmatprep.subr.bf16.mxu0 %v1440
        %1940 = vmatpush1.bf16.msra.mxu0 %v1439
        %1941 = vmatprep.subr.bf16.mxu0 %v1444
        %1942 = vmatpush1.bf16.msra.mxu0 %v1443
        %1943 = vmatprep.subr.bf16.mxu0 %v1448
        %1944 = vmatpush1.bf16.msra.mxu0 %v1447
        %1945 = vmatprep.subr.bf16.mxu0 %v1452
        %1946 = vmatpush1.bf16.msra.mxu0 %v1451
        %1947 = vmatprep.subr.bf16.mxu0 %v1456
        %1948 = vmatpush1.bf16.msra.mxu0 %v1455
        %1949 = vmatprep.subr.bf16.mxu0 %v1460
        %1950 = vmatpush1.bf16.msra.mxu0 %v1459
        %1951 = vmatprep.subr.bf16.mxu0 %v1464
        %1952 = vmatpush1.bf16.msra.mxu0 %v1463
        %1953 = vmatprep.subr.bf16.mxu0 %v1468
        %1954 = vmatpush1.bf16.msra.mxu0 %v1467
        %1955 = vmatprep.subr.bf16.mxu0 %v1472
        %1956 = vmatpush1.bf16.msra.mxu0 %v1471
        %1957 = vmatprep.subr.bf16.mxu0 %v1476
        %1958 = vmatpush1.bf16.msra.mxu0 %v1475
        %1959 = vmatprep.mubr.bf16.mxu0 %v362
        %1960 = vmatmul.mubr.bf16.gmra.mrb[0].mxu0 %v361
        %v1961 = vpop.f32.mrb[0].mxu0
        %v1962 = vadd.f32 %v630, %v1961
        %v1963 = vpop.f32.mrb[0].mxu0
        %v1964 = vadd.f32 %v634, %v1963
        %v1965 = vpop.f32.mrb[0].mxu0
        %v1966 = vadd.f32 %v630, %v1965
        %v1967 = vpop.f32.mrb[0].mxu0
        %v1968 = vadd.f32 %v634, %v1967
        %1969 = vdwg.mxu0
        %1970 = vmatprep.subr.bf16.mxu0 %v1480
        %1971 = vmatpush1.bf16.msra.mxu0 %v1479
        %1972 = vmatprep.subr.bf16.mxu0 %v1484
        %1973 = vmatpush1.bf16.msra.mxu0 %v1483
        %1974 = vmatprep.subr.bf16.mxu0 %v1488
        %1975 = vmatpush1.bf16.msra.mxu0 %v1487
        %1976 = vmatprep.subr.bf16.mxu0 %v1492
        %1977 = vmatpush1.bf16.msra.mxu0 %v1491
        %1978 = vmatprep.subr.bf16.mxu0 %v1496
        %1979 = vmatpush1.bf16.msra.mxu0 %v1495
        %1980 = vmatprep.subr.bf16.mxu0 %v1500
        %1981 = vmatpush1.bf16.msra.mxu0 %v1499
        %1982 = vmatprep.subr.bf16.mxu0 %v1504
        %1983 = vmatpush1.bf16.msra.mxu0 %v1503
        %1984 = vmatprep.subr.bf16.mxu0 %v1508
        %1985 = vmatpush1.bf16.msra.mxu0 %v1507
        %1986 = vmatprep.subr.bf16.mxu0 %v1512
        %1987 = vmatpush1.bf16.msra.mxu0 %v1511
        %1988 = vmatprep.subr.bf16.mxu0 %v1516
        %1989 = vmatpush1.bf16.msra.mxu0 %v1515
        %1990 = vmatprep.subr.bf16.mxu0 %v1520
        %1991 = vmatpush1.bf16.msra.mxu0 %v1519
        %1992 = vmatprep.subr.bf16.mxu0 %v1524
        %1993 = vmatpush1.bf16.msra.mxu0 %v1523
        %1994 = vmatprep.subr.bf16.mxu0 %v1528
        %1995 = vmatpush1.bf16.msra.mxu0 %v1527
        %1996 = vmatprep.subr.bf16.mxu0 %v1532
        %1997 = vmatpush1.bf16.msra.mxu0 %v1531
        %1998 = vmatprep.subr.bf16.mxu0 %v1536
        %1999 = vmatpush1.bf16.msra.mxu0 %v1535
        %2000 = vmatprep.subr.bf16.mxu0 %v1540
        %2001 = vmatpush1.bf16.msra.mxu0 %v1539
        %2002 = vmatprep.mubr.bf16.mxu0 %v364
        %2003 = vmatmul.mubr.bf16.gmra.mrb[0].mxu0 %v363
        %v2004 = vpop.f32.mrb[0].mxu0
        %v2005 = vadd.f32 %v1962, %v2004
        %v2006 = vpop.f32.mrb[0].mxu0
        %v2007 = vadd.f32 %v1964, %v2006
        %v2008 = vpop.f32.mrb[0].mxu0
        %v2009 = vadd.f32 %v1966, %v2008
        %v2010 = vpop.f32.mrb[0].mxu0
        %v2011 = vadd.f32 %v1968, %v2010
        %2012 = vdwg.mxu0
        %2013 = vmatprep.subr.bf16.mxu0 %v1544
        %2014 = vmatpush1.bf16.msra.mxu0 %v1543
        %2015 = vmatprep.subr.bf16.mxu0 %v1548
        %2016 = vmatpush1.bf16.msra.mxu0 %v1547
        %2017 = vmatprep.subr.bf16.mxu0 %v1552
        %2018 = vmatpush1.bf16.msra.mxu0 %v1551
        %2019 = vmatprep.subr.bf16.mxu0 %v1556
        %2020 = vmatpush1.bf16.msra.mxu0 %v1555
        %2021 = vmatprep.subr.bf16.mxu0 %v1560
        %2022 = vmatpush1.bf16.msra.mxu0 %v1559
        %2023 = vmatprep.subr.bf16.mxu0 %v1564
        %2024 = vmatpush1.bf16.msra.mxu0 %v1563
        %2025 = vmatprep.subr.bf16.mxu0 %v1568
        %2026 = vmatpush1.bf16.msra.mxu0 %v1567
        %2027 = vmatprep.subr.bf16.mxu0 %v1572
        %2028 = vmatpush1.bf16.msra.mxu0 %v1571
        %2029 = vmatprep.subr.bf16.mxu0 %v1576
        %2030 = vmatpush1.bf16.msra.mxu0 %v1575
        %2031 = vmatprep.subr.bf16.mxu0 %v1580
        %2032 = vmatpush1.bf16.msra.mxu0 %v1579
        %2033 = vmatprep.subr.bf16.mxu0 %v1584
        %2034 = vmatpush1.bf16.msra.mxu0 %v1583
        %2035 = vmatprep.subr.bf16.mxu0 %v1588
        %2036 = vmatpush1.bf16.msra.mxu0 %v1587
        %2037 = vmatprep.subr.bf16.mxu0 %v1592
        %2038 = vmatpush1.bf16.msra.mxu0 %v1591
        %2039 = vmatprep.subr.bf16.mxu0 %v1596
        %2040 = vmatpush1.bf16.msra.mxu0 %v1595
        %2041 = vmatprep.subr.bf16.mxu0 %v1600
        %2042 = vmatpush1.bf16.msra.mxu0 %v1599
        %2043 = vmatprep.subr.bf16.mxu0 %v1604
        %2044 = vmatpush1.bf16.msra.mxu0 %v1603
        %2045 = vmatprep.mubr.bf16.mxu0 %v366
        %2046 = vmatmul.mubr.bf16.gmra.mrb[0].mxu0 %v365
        %v2047 = vpop.f32.mrb[0].mxu0
        %v2048 = vadd.f32 %v2005, %v2047
        %v2049 = vpop.f32.mrb[0].mxu0
        %v2050 = vadd.f32 %v2007, %v2049
        %v2051 = vpop.f32.mrb[0].mxu0
        %v2052 = vadd.f32 %v2009, %v2051
        %v2053 = vpop.f32.mrb[0].mxu0
        %v2054 = vadd.f32 %v2011, %v2053
        %2055 = vdwg.mxu0
        %2056 = vmatprep.subr.bf16.mxu0 %v1608
        %2057 = vmatpush1.bf16.msra.mxu0 %v1607
        %2058 = vmatprep.subr.bf16.mxu0 %v1612
        %2059 = vmatpush1.bf16.msra.mxu0 %v1611
        %2060 = vmatprep.subr.bf16.mxu0 %v1616
        %2061 = vmatpush1.bf16.msra.mxu0 %v1615
        %2062 = vmatprep.subr.bf16.mxu0 %v1620
        %2063 = vmatpush1.bf16.msra.mxu0 %v1619
        %2064 = vmatprep.subr.bf16.mxu0 %v1624
        %2065 = vmatpush1.bf16.msra.mxu0 %v1623
        %2066 = vmatprep.subr.bf16.mxu0 %v1628
        %2067 = vmatpush1.bf16.msra.mxu0 %v1627
        %2068 = vmatprep.subr.bf16.mxu0 %v1632
        %2069 = vmatpush1.bf16.msra.mxu0 %v1631
        %2070 = vmatprep.subr.bf16.mxu0 %v1636
        %2071 = vmatpush1.bf16.msra.mxu0 %v1635
        %2072 = vmatprep.subr.bf16.mxu0 %v1640
        %2073 = vmatpush1.bf16.msra.mxu0 %v1639
        %2074 = vmatprep.subr.bf16.mxu0 %v1644
        %2075 = vmatpush1.bf16.msra.mxu0 %v1643
        %2076 = vmatprep.subr.bf16.mxu0 %v1648
        %2077 = vmatpush1.bf16.msra.mxu0 %v1647
        %2078 = vmatprep.subr.bf16.mxu0 %v1652
        %2079 = vmatpush1.bf16.msra.mxu0 %v1651
        %2080 = vmatprep.subr.bf16.mxu0 %v1656
        %2081 = vmatpush1.bf16.msra.mxu0 %v1655
        %2082 = vmatprep.subr.bf16.mxu0 %v1660
        %2083 = vmatpush1.bf16.msra.mxu0 %v1659
        %2084 = vmatprep.subr.bf16.mxu0 %v1664
        %2085 = vmatpush1.bf16.msra.mxu0 %v1663
        %2086 = vmatprep.subr.bf16.mxu0 %v1668
        %2087 = vmatpush1.bf16.msra.mxu0 %v1667
        %2088 = vmatprep.mubr.bf16.mxu0 %v368
        %2089 = vmatmul.mubr.bf16.gmra.mrb[0].mxu0 %v367
        %v2090 = vpop.f32.mrb[0].mxu0
        %v2091 = vadd.f32 %v2048, %v2090
        %v2092 = vpop.f32.mrb[0].mxu0
        %v2093 = vadd.f32 %v2050, %v2092
        %v2094 = vpop.f32.mrb[0].mxu0
        %v2095 = vadd.f32 %v2052, %v2094
        %v2096 = vpop.f32.mrb[0].mxu0
        %v2097 = vadd.f32 %v2054, %v2096
        %2098 = vdwg.mxu0
        %2099 = vmatprep.subr.bf16.mxu0 %v1418
        %2100 = vmatpush1.bf16.msra.mxu0 %v1417
        %2101 = vmatprep.subr.bf16.mxu0 %v1422
        %2102 = vmatpush1.bf16.msra.mxu0 %v1421
        %2103 = vmatprep.subr.bf16.mxu0 %v1426
        %2104 = vmatpush1.bf16.msra.mxu0 %v1425
        %2105 = vmatprep.subr.bf16.mxu0 %v1430
        %2106 = vmatpush1.bf16.msra.mxu0 %v1429
        %2107 = vmatprep.subr.bf16.mxu0 %v1434
        %2108 = vmatpush1.bf16.msra.mxu0 %v1433
        %2109 = vmatprep.subr.bf16.mxu0 %v1438
        %2110 = vmatpush1.bf16.msra.mxu0 %v1437
        %2111 = vmatprep.subr.bf16.mxu0 %v1442
        %2112 = vmatpush1.bf16.msra.mxu0 %v1441
        %2113 = vmatprep.subr.bf16.mxu0 %v1446
        %2114 = vmatpush1.bf16.msra.mxu0 %v1445
        %2115 = vmatprep.subr.bf16.mxu0 %v1450
        %2116 = vmatpush1.bf16.msra.mxu0 %v1449
        %2117 = vmatprep.subr.bf16.mxu0 %v1454
        %2118 = vmatpush1.bf16.msra.mxu0 %v1453
        %2119 = vmatprep.subr.bf16.mxu0 %v1458
        %2120 = vmatpush1.bf16.msra.mxu0 %v1457
        %2121 = vmatprep.subr.bf16.mxu0 %v1462
        %2122 = vmatpush1.bf16.msra.mxu0 %v1461
        %2123 = vmatprep.subr.bf16.mxu0 %v1466
        %2124 = vmatpush1.bf16.msra.mxu0 %v1465
        %2125 = vmatprep.subr.bf16.mxu0 %v1470
        %2126 = vmatpush1.bf16.msra.mxu0 %v1469
        %2127 = vmatprep.subr.bf16.mxu0 %v1474
        %2128 = vmatpush1.bf16.msra.mxu0 %v1473
        %2129 = vmatprep.subr.bf16.mxu0 %v1478
        %2130 = vmatpush1.bf16.msra.mxu0 %v1477
        %2131 = vmatprep.mubr.bf16.mxu0 %v362
        %2132 = vmatmul.mubr.bf16.gmra.mrb[0].mxu0 %v361
        %v2133 = vpop.f32.mrb[0].mxu0
        %v2134 = vadd.f32 %v638, %v2133
        %v2135 = vpop.f32.mrb[0].mxu0
        %v2136 = vadd.f32 %v642, %v2135
        %v2137 = vpop.f32.mrb[0].mxu0
        %v2138 = vadd.f32 %v638, %v2137
        %v2139 = vpop.f32.mrb[0].mxu0
        %v2140 = vadd.f32 %v642, %v2139
        %2141 = vdwg.mxu0
        %2142 = vmatprep.subr.bf16.mxu0 %v1482
        %2143 = vmatpush1.bf16.msra.mxu0 %v1481
        %2144 = vmatprep.subr.bf16.mxu0 %v1486
        %2145 = vmatpush1.bf16.msra.mxu0 %v1485
        %2146 = vmatprep.subr.bf16.mxu0 %v1490
        %2147 = vmatpush1.bf16.msra.mxu0 %v1489
        %2148 = vmatprep.subr.bf16.mxu0 %v1494
        %2149 = vmatpush1.bf16.msra.mxu0 %v1493
        %2150 = vmatprep.subr.bf16.mxu0 %v1498
        %2151 = vmatpush1.bf16.msra.mxu0 %v1497
        %2152 = vmatprep.subr.bf16.mxu0 %v1502
        %2153 = vmatpush1.bf16.msra.mxu0 %v1501
        %2154 = vmatprep.subr.bf16.mxu0 %v1506
        %2155 = vmatpush1.bf16.msra.mxu0 %v1505
        %2156 = vmatprep.subr.bf16.mxu0 %v1510
        %2157 = vmatpush1.bf16.msra.mxu0 %v1509
        %2158 = vmatprep.subr.bf16.mxu0 %v1514
        %2159 = vmatpush1.bf16.msra.mxu0 %v1513
        %2160 = vmatprep.subr.bf16.mxu0 %v1518
        %2161 = vmatpush1.bf16.msra.mxu0 %v1517
        %2162 = vmatprep.subr.bf16.mxu0 %v1522
        %2163 = vmatpush1.bf16.msra.mxu0 %v1521
        %2164 = vmatprep.subr.bf16.mxu0 %v1526
        %2165 = vmatpush1.bf16.msra.mxu0 %v1525
        %2166 = vmatprep.subr.bf16.mxu0 %v1530
        %2167 = vmatpush1.bf16.msra.mxu0 %v1529
        %2168 = vmatprep.subr.bf16.mxu0 %v1534
        %2169 = vmatpush1.bf16.msra.mxu0 %v1533
        %2170 = vmatprep.subr.bf16.mxu0 %v1538
        %2171 = vmatpush1.bf16.msra.mxu0 %v1537
        %2172 = vmatprep.subr.bf16.mxu0 %v1542
        %2173 = vmatpush1.bf16.msra.mxu0 %v1541
        %2174 = vmatprep.mubr.bf16.mxu0 %v364
        %2175 = vmatmul.mubr.bf16.gmra.mrb[0].mxu0 %v363
        %v2176 = vpop.f32.mrb[0].mxu0
        %v2177 = vadd.f32 %v2134, %v2176
        %v2178 = vpop.f32.mrb[0].mxu0
        %v2179 = vadd.f32 %v2136, %v2178
        %v2180 = vpop.f32.mrb[0].mxu0
        %v2181 = vadd.f32 %v2138, %v2180
        %v2182 = vpop.f32.mrb[0].mxu0
        %v2183 = vadd.f32 %v2140, %v2182
        %2184 = vdwg.mxu0
        %2185 = vmatprep.subr.bf16.mxu0 %v1546
        %2186 = vmatpush1.bf16.msra.mxu0 %v1545
        %2187 = vmatprep.subr.bf16.mxu0 %v1550
        %2188 = vmatpush1.bf16.msra.mxu0 %v1549
        %2189 = vmatprep.subr.bf16.mxu0 %v1554
        %2190 = vmatpush1.bf16.msra.mxu0 %v1553
        %2191 = vmatprep.subr.bf16.mxu0 %v1558
        %2192 = vmatpush1.bf16.msra.mxu0 %v1557
        %2193 = vmatprep.subr.bf16.mxu0 %v1562
        %2194 = vmatpush1.bf16.msra.mxu0 %v1561
        %2195 = vmatprep.subr.bf16.mxu0 %v1566
        %2196 = vmatpush1.bf16.msra.mxu0 %v1565
        %2197 = vmatprep.subr.bf16.mxu0 %v1570
        %2198 = vmatpush1.bf16.msra.mxu0 %v1569
        %2199 = vmatprep.subr.bf16.mxu0 %v1574
        %2200 = vmatpush1.bf16.msra.mxu0 %v1573
        %2201 = vmatprep.subr.bf16.mxu0 %v1578
        %2202 = vmatpush1.bf16.msra.mxu0 %v1577
        %2203 = vmatprep.subr.bf16.mxu0 %v1582
        %2204 = vmatpush1.bf16.msra.mxu0 %v1581
        %2205 = vmatprep.subr.bf16.mxu0 %v1586
        %2206 = vmatpush1.bf16.msra.mxu0 %v1585
        %2207 = vmatprep.subr.bf16.mxu0 %v1590
        %2208 = vmatpush1.bf16.msra.mxu0 %v1589
        %2209 = vmatprep.subr.bf16.mxu0 %v1594
        %2210 = vmatpush1.bf16.msra.mxu0 %v1593
        %2211 = vmatprep.subr.bf16.mxu0 %v1598
        %2212 = vmatpush1.bf16.msra.mxu0 %v1597
        %2213 = vmatprep.subr.bf16.mxu0 %v1602
        %2214 = vmatpush1.bf16.msra.mxu0 %v1601
        %2215 = vmatprep.subr.bf16.mxu0 %v1606
        %2216 = vmatpush1.bf16.msra.mxu0 %v1605
        %2217 = vmatprep.mubr.bf16.mxu0 %v366
        %2218 = vmatmul.mubr.bf16.gmra.mrb[0].mxu0 %v365
        %v2219 = vpop.f32.mrb[0].mxu0
        %v2220 = vadd.f32 %v2177, %v2219
        %v2221 = vpop.f32.mrb[0].mxu0
        %v2222 = vadd.f32 %v2179, %v2221
        %v2223 = vpop.f32.mrb[0].mxu0
        %v2224 = vadd.f32 %v2181, %v2223
        %v2225 = vpop.f32.mrb[0].mxu0
        %v2226 = vadd.f32 %v2183, %v2225
        %2227 = vdwg.mxu0
        %2228 = vmatprep.subr.bf16.mxu0 %v1610
        %2229 = vmatpush1.bf16.msra.mxu0 %v1609
        %2230 = vmatprep.subr.bf16.mxu0 %v1614
        %2231 = vmatpush1.bf16.msra.mxu0 %v1613
        %2232 = vmatprep.subr.bf16.mxu0 %v1618
        %2233 = vmatpush1.bf16.msra.mxu0 %v1617
        %2234 = vmatprep.subr.bf16.mxu0 %v1622
        %2235 = vmatpush1.bf16.msra.mxu0 %v1621
        %2236 = vmatprep.subr.bf16.mxu0 %v1626
        %2237 = vmatpush1.bf16.msra.mxu0 %v1625
        %2238 = vmatprep.subr.bf16.mxu0 %v1630
        %2239 = vmatpush1.bf16.msra.mxu0 %v1629
        %2240 = vmatprep.subr.bf16.mxu0 %v1634
        %2241 = vmatpush1.bf16.msra.mxu0 %v1633
        %2242 = vmatprep.subr.bf16.mxu0 %v1638
        %2243 = vmatpush1.bf16.msra.mxu0 %v1637
        %2244 = vmatprep.subr.bf16.mxu0 %v1642
        %2245 = vmatpush1.bf16.msra.mxu0 %v1641
        %2246 = vmatprep.subr.bf16.mxu0 %v1646
        %2247 = vmatpush1.bf16.msra.mxu0 %v1645
        %2248 = vmatprep.subr.bf16.mxu0 %v1650
        %2249 = vmatpush1.bf16.msra.mxu0 %v1649
        %2250 = vmatprep.subr.bf16.mxu0 %v1654
        %2251 = vmatpush1.bf16.msra.mxu0 %v1653
        %2252 = vmatprep.subr.bf16.mxu0 %v1658
        %2253 = vmatpush1.bf16.msra.mxu0 %v1657
        %2254 = vmatprep.subr.bf16.mxu0 %v1662
        %2255 = vmatpush1.bf16.msra.mxu0 %v1661
        %2256 = vmatprep.subr.bf16.mxu0 %v1666
        %2257 = vmatpush1.bf16.msra.mxu0 %v1665
        %2258 = vmatprep.subr.bf16.mxu0 %v1670
        %2259 = vmatpush1.bf16.msra.mxu0 %v1669
        %2260 = vmatprep.mubr.bf16.mxu0 %v368
        %2261 = vmatmul.mubr.bf16.gmra.mrb[0].mxu0 %v367
        %v2262 = vpop.f32.mrb[0].mxu0
        %v2263 = vadd.f32 %v2220, %v2262
        %v2264 = vpop.f32.mrb[0].mxu0
        %v2265 = vadd.f32 %v2222, %v2264
        %v2266 = vpop.f32.mrb[0].mxu0
        %v2267 = vadd.f32 %v2224, %v2266
        %v2268 = vpop.f32.mrb[0].mxu0
        %v2269 = vadd.f32 %v2226, %v2268
        %2270 = vdwg.mxu0
        %v2271 = vmax.f32 %v2091, 0.0
        %v2272 = vmax.f32 %v2093, 0.0
        %v2273 = vmax.f32 %v2263, 0.0
        %v2274 = vmax.f32 %v2265, 0.0
        %v2275 = vmax.f32 %v2095, 0.0
        %v2276 = vmax.f32 %v2097, 0.0
        %v2277 = vmax.f32 %v2267, 0.0
        %v2278 = vmax.f32 %v2269, 0.0
        %v2279 = vpack.c.bf16 %v2275, %v2271
        %v2280 = vpack.c.bf16 %v2276, %v2272
        %v2281 = vpack.c.bf16 %v2277, %v2273
        %v2282 = vpack.c.bf16 %v2278, %v2274
        %v2283 = vld [vmem:[#allocation7] sm:$0xff]
        %v2284 = vld [vmem:[#allocation7 + $0x8] sm:$0xff]
        %v2285 = vld [vmem:[#allocation7 + $0x10] sm:$0xff]
        %v2286 = vld [vmem:[#allocation7 + $0x18] sm:$0xff]
        %v2287 = vld [vmem:[#allocation7 + $0x20] sm:$0xff]
        %v2288 = vld [vmem:[#allocation7 + $0x28] sm:$0xff]
        %v2289 = vld [vmem:[#allocation7 + $0x30] sm:$0xff]
        %v2290 = vld [vmem:[#allocation7 + $0x38] sm:$0xff]
        %v2291 = vld [vmem:[#allocation7 + $0x40] sm:$0xff]
        %v2292 = vld [vmem:[#allocation7 + $0x48] sm:$0xff]
        %v2293 = vld [vmem:[#allocation7 + $0x50] sm:$0xff]
        %v2294 = vld [vmem:[#allocation7 + $0x58] sm:$0xff]
        %v2295 = vld [vmem:[#allocation7 + $0x60] sm:$0xff]
        %v2296 = vld [vmem:[#allocation7 + $0x68] sm:$0xff]
        %v2297 = vld [vmem:[#allocation7 + $0x70] sm:$0xff]
        %v2298 = vld [vmem:[#allocation7 + $0x78] sm:$0xff]
        %v2299 = vld [vmem:[#allocation7 + $0x80] sm:$0xff]
        %v2300 = vld [vmem:[#allocation7 + $0x88] sm:$0xff]
        %v2301 = vld [vmem:[#allocation7 + $0x90] sm:$0xff]
        %v2302 = vld [vmem:[#allocation7 + $0x98] sm:$0xff]
        %v2303 = vld [vmem:[#allocation7 + $0xa0] sm:$0xff]
        %v2304 = vld [vmem:[#allocation7 + $0xa8] sm:$0xff]
        %v2305 = vld [vmem:[#allocation7 + $0xb0] sm:$0xff]
        %v2306 = vld [vmem:[#allocation7 + $0xb8] sm:$0xff]
        %v2307 = vld [vmem:[#allocation7 + $0xc0] sm:$0xff]
        %v2308 = vld [vmem:[#allocation7 + $0xc8] sm:$0xff]
        %v2309 = vld [vmem:[#allocation7 + $0xd0] sm:$0xff]
        %v2310 = vld [vmem:[#allocation7 + $0xd8] sm:$0xff]
        %v2311 = vld [vmem:[#allocation7 + $0xe0] sm:$0xff]
        %v2312 = vld [vmem:[#allocation7 + $0xe8] sm:$0xff]
        %v2313 = vld [vmem:[#allocation7 + $0xf0] sm:$0xff]
        %v2314 = vld [vmem:[#allocation7 + $0xf8] sm:$0xff]
        %v2315 = vld [vmem:[#allocation7 + $0x100] sm:$0xff]
        %v2316 = vld [vmem:[#allocation7 + $0x108] sm:$0xff]
        %v2317 = vld [vmem:[#allocation7 + $0x110] sm:$0xff]
        %v2318 = vld [vmem:[#allocation7 + $0x118] sm:$0xff]
        %v2319 = vld [vmem:[#allocation7 + $0x120] sm:$0xff]
        %v2320 = vld [vmem:[#allocation7 + $0x128] sm:$0xff]
        %v2321 = vld [vmem:[#allocation7 + $0x130] sm:$0xff]
        %v2322 = vld [vmem:[#allocation7 + $0x138] sm:$0xff]
        %v2323 = vld [vmem:[#allocation7 + $0x140] sm:$0xff]
        %v2324 = vld [vmem:[#allocation7 + $0x148] sm:$0xff]
        %v2325 = vld [vmem:[#allocation7 + $0x150] sm:$0xff]
        %v2326 = vld [vmem:[#allocation7 + $0x158] sm:$0xff]
        %v2327 = vld [vmem:[#allocation7 + $0x160] sm:$0xff]
        %v2328 = vld [vmem:[#allocation7 + $0x168] sm:$0xff]
        %v2329 = vld [vmem:[#allocation7 + $0x170] sm:$0xff]
        %v2330 = vld [vmem:[#allocation7 + $0x178] sm:$0xff]
        %v2331 = vld [vmem:[#allocation7 + $0x180] sm:$0xff]
        %v2332 = vld [vmem:[#allocation7 + $0x188] sm:$0xff]
        %v2333 = vld [vmem:[#allocation7 + $0x190] sm:$0xff]
        %v2334 = vld [vmem:[#allocation7 + $0x198] sm:$0xff]
        %v2335 = vld [vmem:[#allocation7 + $0x1a0] sm:$0xff]
        %v2336 = vld [vmem:[#allocation7 + $0x1a8] sm:$0xff]
        %v2337 = vld [vmem:[#allocation7 + $0x1b0] sm:$0xff]
        %v2338 = vld [vmem:[#allocation7 + $0x1b8] sm:$0xff]
        %v2339 = vld [vmem:[#allocation7 + $0x1c0] sm:$0xff]
        %v2340 = vld [vmem:[#allocation7 + $0x1c8] sm:$0xff]
        %v2341 = vld [vmem:[#allocation7 + $0x1d0] sm:$0xff]
        %v2342 = vld [vmem:[#allocation7 + $0x1d8] sm:$0xff]
        %v2343 = vld [vmem:[#allocation7 + $0x1e0] sm:$0xff]
        %v2344 = vld [vmem:[#allocation7 + $0x1e8] sm:$0xff]
        %v2345 = vld [vmem:[#allocation7 + $0x1f0] sm:$0xff]
        %v2346 = vld [vmem:[#allocation7 + $0x1f8] sm:$0xff]
        %v2347 = vld [vmem:[%s4] sm:$0x3]
        %v2349 = vlaneseq
        %v2350 = vshrl.u32 %v2349, 7
        %v2351 = vsub.s32 0, %v2350
        %v2352 = vrot.slane %v2347, %v2351
        %v2353 = vlaneseq
        %v2354 = vshrl.u32 %v2353, 7
        %v2355 = vsub.s32 1, %v2354
        %v2356 = vrot.slane %v2347, %v2355
        %v2423 = vunpack.c.l.b16 %v2283
        %v2424 = vunpack.c.h.b16 %v2283
        %v2425 = vunpack.c.l.b16 %v2284
        %v2426 = vunpack.c.h.b16 %v2284
        %v2427 = vunpack.c.l.b16 %v2285
        %v2428 = vunpack.c.h.b16 %v2285
        %v2429 = vunpack.c.l.b16 %v2286
        %v2430 = vunpack.c.h.b16 %v2286
        %v2431 = vunpack.c.l.b16 %v2287
        %v2432 = vunpack.c.h.b16 %v2287
        %v2433 = vunpack.c.l.b16 %v2288
        %v2434 = vunpack.c.h.b16 %v2288
        %v2435 = vunpack.c.l.b16 %v2289
        %v2436 = vunpack.c.h.b16 %v2289
        %v2437 = vunpack.c.l.b16 %v2290
        %v2438 = vunpack.c.h.b16 %v2290
        %v2439 = vunpack.c.l.b16 %v2291
        %v2440 = vunpack.c.h.b16 %v2291
        %v2441 = vunpack.c.l.b16 %v2292
        %v2442 = vunpack.c.h.b16 %v2292
        %v2443 = vunpack.c.l.b16 %v2293
        %v2444 = vunpack.c.h.b16 %v2293
        %v2445 = vunpack.c.l.b16 %v2294
        %v2446 = vunpack.c.h.b16 %v2294
        %v2447 = vunpack.c.l.b16 %v2295
        %v2448 = vunpack.c.h.b16 %v2295
        %v2449 = vunpack.c.l.b16 %v2296
        %v2450 = vunpack.c.h.b16 %v2296
        %v2451 = vunpack.c.l.b16 %v2297
        %v2452 = vunpack.c.h.b16 %v2297
        %v2453 = vunpack.c.l.b16 %v2298
        %v2454 = vunpack.c.h.b16 %v2298
        %v2455 = vunpack.c.l.b16 %v2299
        %v2456 = vunpack.c.h.b16 %v2299
        %v2457 = vunpack.c.l.b16 %v2300
        %v2458 = vunpack.c.h.b16 %v2300
        %v2459 = vunpack.c.l.b16 %v2301
        %v2460 = vunpack.c.h.b16 %v2301
        %v2461 = vunpack.c.l.b16 %v2302
        %v2462 = vunpack.c.h.b16 %v2302
        %v2463 = vunpack.c.l.b16 %v2303
        %v2464 = vunpack.c.h.b16 %v2303
        %v2465 = vunpack.c.l.b16 %v2304
        %v2466 = vunpack.c.h.b16 %v2304
        %v2467 = vunpack.c.l.b16 %v2305
        %v2468 = vunpack.c.h.b16 %v2305
        %v2469 = vunpack.c.l.b16 %v2306
        %v2470 = vunpack.c.h.b16 %v2306
        %v2471 = vunpack.c.l.b16 %v2307
        %v2472 = vunpack.c.h.b16 %v2307
        %v2473 = vunpack.c.l.b16 %v2308
        %v2474 = vunpack.c.h.b16 %v2308
        %v2475 = vunpack.c.l.b16 %v2309
        %v2476 = vunpack.c.h.b16 %v2309
        %v2477 = vunpack.c.l.b16 %v2310
        %v2478 = vunpack.c.h.b16 %v2310
        %v2479 = vunpack.c.l.b16 %v2311
        %v2480 = vunpack.c.h.b16 %v2311
        %v2481 = vunpack.c.l.b16 %v2312
        %v2482 = vunpack.c.h.b16 %v2312
        %v2483 = vunpack.c.l.b16 %v2313
        %v2484 = vunpack.c.h.b16 %v2313
        %v2485 = vunpack.c.l.b16 %v2314
        %v2486 = vunpack.c.h.b16 %v2314
        %v2487 = vunpack.c.l.b16 %v2315
        %v2488 = vunpack.c.h.b16 %v2315
        %v2489 = vunpack.c.l.b16 %v2316
        %v2490 = vunpack.c.h.b16 %v2316
        %v2491 = vunpack.c.l.b16 %v2317
        %v2492 = vunpack.c.h.b16 %v2317
        %v2493 = vunpack.c.l.b16 %v2318
        %v2494 = vunpack.c.h.b16 %v2318
        %v2495 = vunpack.c.l.b16 %v2319
        %v2496 = vunpack.c.h.b16 %v2319
        %v2497 = vunpack.c.l.b16 %v2320
        %v2498 = vunpack.c.h.b16 %v2320
        %v2499 = vunpack.c.l.b16 %v2321
        %v2500 = vunpack.c.h.b16 %v2321
        %v2501 = vunpack.c.l.b16 %v2322
        %v2502 = vunpack.c.h.b16 %v2322
        %v2503 = vunpack.c.l.b16 %v2323
        %v2504 = vunpack.c.h.b16 %v2323
        %v2505 = vunpack.c.l.b16 %v2324
        %v2506 = vunpack.c.h.b16 %v2324
        %v2507 = vunpack.c.l.b16 %v2325
        %v2508 = vunpack.c.h.b16 %v2325
        %v2509 = vunpack.c.l.b16 %v2326
        %v2510 = vunpack.c.h.b16 %v2326
        %v2511 = vunpack.c.l.b16 %v2327
        %v2512 = vunpack.c.h.b16 %v2327
        %v2513 = vunpack.c.l.b16 %v2328
        %v2514 = vunpack.c.h.b16 %v2328
        %v2515 = vunpack.c.l.b16 %v2329
        %v2516 = vunpack.c.h.b16 %v2329
        %v2517 = vunpack.c.l.b16 %v2330
        %v2518 = vunpack.c.h.b16 %v2330
        %v2519 = vunpack.c.l.b16 %v2331
        %v2520 = vunpack.c.h.b16 %v2331
        %v2521 = vunpack.c.l.b16 %v2332
        %v2522 = vunpack.c.h.b16 %v2332
        %v2523 = vunpack.c.l.b16 %v2333
        %v2524 = vunpack.c.h.b16 %v2333
        %v2525 = vunpack.c.l.b16 %v2334
        %v2526 = vunpack.c.h.b16 %v2334
        %v2527 = vunpack.c.l.b16 %v2335
        %v2528 = vunpack.c.h.b16 %v2335
        %v2529 = vunpack.c.l.b16 %v2336
        %v2530 = vunpack.c.h.b16 %v2336
        %v2531 = vunpack.c.l.b16 %v2337
        %v2532 = vunpack.c.h.b16 %v2337
        %v2533 = vunpack.c.l.b16 %v2338
        %v2534 = vunpack.c.h.b16 %v2338
        %v2535 = vunpack.c.l.b16 %v2339
        %v2536 = vunpack.c.h.b16 %v2339
        %v2537 = vunpack.c.l.b16 %v2340
        %v2538 = vunpack.c.h.b16 %v2340
        %v2539 = vunpack.c.l.b16 %v2341
        %v2540 = vunpack.c.h.b16 %v2341
        %v2541 = vunpack.c.l.b16 %v2342
        %v2542 = vunpack.c.h.b16 %v2342
        %v2543 = vunpack.c.l.b16 %v2343
        %v2544 = vunpack.c.h.b16 %v2343
        %v2545 = vunpack.c.l.b16 %v2344
        %v2546 = vunpack.c.h.b16 %v2344
        %v2547 = vunpack.c.l.b16 %v2345
        %v2548 = vunpack.c.h.b16 %v2345
        %v2549 = vunpack.c.l.b16 %v2346
        %v2550 = vunpack.c.h.b16 %v2346
        %v2551 = vpack.c.b16 %v2425, %v2423
        %v2552 = vpack.c.b16 %v2426, %v2424
        %v2553 = vpack.c.b16 %v2429, %v2427
        %v2554 = vpack.c.b16 %v2430, %v2428
        %v2555 = vpack.c.b16 %v2433, %v2431
        %v2556 = vpack.c.b16 %v2434, %v2432
        %v2557 = vpack.c.b16 %v2437, %v2435
        %v2558 = vpack.c.b16 %v2438, %v2436
        %v2559 = vpack.c.b16 %v2441, %v2439
        %v2560 = vpack.c.b16 %v2442, %v2440
        %v2561 = vpack.c.b16 %v2445, %v2443
        %v2562 = vpack.c.b16 %v2446, %v2444
        %v2563 = vpack.c.b16 %v2449, %v2447
        %v2564 = vpack.c.b16 %v2450, %v2448
        %v2565 = vpack.c.b16 %v2453, %v2451
        %v2566 = vpack.c.b16 %v2454, %v2452
        %v2567 = vpack.c.b16 %v2457, %v2455
        %v2568 = vpack.c.b16 %v2458, %v2456
        %v2569 = vpack.c.b16 %v2461, %v2459
        %v2570 = vpack.c.b16 %v2462, %v2460
        %v2571 = vpack.c.b16 %v2465, %v2463
        %v2572 = vpack.c.b16 %v2466, %v2464
        %v2573 = vpack.c.b16 %v2469, %v2467
        %v2574 = vpack.c.b16 %v2470, %v2468
        %v2575 = vpack.c.b16 %v2473, %v2471
        %v2576 = vpack.c.b16 %v2474, %v2472
        %v2577 = vpack.c.b16 %v2477, %v2475
        %v2578 = vpack.c.b16 %v2478, %v2476
        %v2579 = vpack.c.b16 %v2481, %v2479
        %v2580 = vpack.c.b16 %v2482, %v2480
        %v2581 = vpack.c.b16 %v2485, %v2483
        %v2582 = vpack.c.b16 %v2486, %v2484
        %v2583 = vpack.c.b16 %v2489, %v2487
        %v2584 = vpack.c.b16 %v2490, %v2488
        %v2585 = vpack.c.b16 %v2493, %v2491
        %v2586 = vpack.c.b16 %v2494, %v2492
        %v2587 = vpack.c.b16 %v2497, %v2495
        %v2588 = vpack.c.b16 %v2498, %v2496
        %v2589 = vpack.c.b16 %v2501, %v2499
        %v2590 = vpack.c.b16 %v2502, %v2500
        %v2591 = vpack.c.b16 %v2505, %v2503
        %v2592 = vpack.c.b16 %v2506, %v2504
        %v2593 = vpack.c.b16 %v2509, %v2507
        %v2594 = vpack.c.b16 %v2510, %v2508
        %v2595 = vpack.c.b16 %v2513, %v2511
        %v2596 = vpack.c.b16 %v2514, %v2512
        %v2597 = vpack.c.b16 %v2517, %v2515
        %v2598 = vpack.c.b16 %v2518, %v2516
        %v2599 = vpack.c.b16 %v2521, %v2519
        %v2600 = vpack.c.b16 %v2522, %v2520
        %v2601 = vpack.c.b16 %v2525, %v2523
        %v2602 = vpack.c.b16 %v2526, %v2524
        %v2603 = vpack.c.b16 %v2529, %v2527
        %v2604 = vpack.c.b16 %v2530, %v2528
        %v2605 = vpack.c.b16 %v2533, %v2531
        %v2606 = vpack.c.b16 %v2534, %v2532
        %v2607 = vpack.c.b16 %v2537, %v2535
        %v2608 = vpack.c.b16 %v2538, %v2536
        %v2609 = vpack.c.b16 %v2541, %v2539
        %v2610 = vpack.c.b16 %v2542, %v2540
        %v2611 = vpack.c.b16 %v2545, %v2543
        %v2612 = vpack.c.b16 %v2546, %v2544
        %v2613 = vpack.c.b16 %v2549, %v2547
        %v2614 = vpack.c.b16 %v2550, %v2548
        %2679 = vmatprep.subr.bf16.mxu0 %v2552
        %2680 = vmatpush1.bf16.msra.mxu0 %v2551
        %2681 = vmatprep.subr.bf16.mxu0 %v2554
        %2682 = vmatpush1.bf16.msra.mxu0 %v2553
        %2683 = vmatprep.subr.bf16.mxu0 %v2556
        %2684 = vmatpush1.bf16.msra.mxu0 %v2555
        %2685 = vmatprep.subr.bf16.mxu0 %v2558
        %2686 = vmatpush1.bf16.msra.mxu0 %v2557
        %2687 = vmatprep.subr.bf16.mxu0 %v2560
        %2688 = vmatpush1.bf16.msra.mxu0 %v2559
        %2689 = vmatprep.subr.bf16.mxu0 %v2562
        %2690 = vmatpush1.bf16.msra.mxu0 %v2561
        %2691 = vmatprep.subr.bf16.mxu0 %v2564
        %2692 = vmatpush1.bf16.msra.mxu0 %v2563
        %2693 = vmatprep.subr.bf16.mxu0 %v2566
        %2694 = vmatpush1.bf16.msra.mxu0 %v2565
        %2695 = vmatprep.subr.bf16.mxu0 %v2568
        %2696 = vmatpush1.bf16.msra.mxu0 %v2567
        %2697 = vmatprep.subr.bf16.mxu0 %v2570
        %2698 = vmatpush1.bf16.msra.mxu0 %v2569
        %2699 = vmatprep.subr.bf16.mxu0 %v2572
        %2700 = vmatpush1.bf16.msra.mxu0 %v2571
        %2701 = vmatprep.subr.bf16.mxu0 %v2574
        %2702 = vmatpush1.bf16.msra.mxu0 %v2573
        %2703 = vmatprep.subr.bf16.mxu0 %v2576
        %2704 = vmatpush1.bf16.msra.mxu0 %v2575
        %2705 = vmatprep.subr.bf16.mxu0 %v2578
        %2706 = vmatpush1.bf16.msra.mxu0 %v2577
        %2707 = vmatprep.subr.bf16.mxu0 %v2580
        %2708 = vmatpush1.bf16.msra.mxu0 %v2579
        %2709 = vmatprep.subr.bf16.mxu0 %v2582
        %2710 = vmatpush1.bf16.msra.mxu0 %v2581
        %2711 = vmatprep.mubr.bf16.mxu0 %v2280
        %2712 = vmatmul.mubr.bf16.gmra.mrb[0].mxu0 %v2279
        %v2713 = vpop.f32.mrb[0].mxu0
        %v2714 = vadd.f32 %v2352, %v2713
        %v2715 = vpop.f32.mrb[0].mxu0
        %v2716 = vadd.f32 %v2356, %v2715
        %v2717 = vpop.f32.mrb[0].mxu0
        %v2718 = vadd.f32 %v2352, %v2717
        %v2719 = vpop.f32.mrb[0].mxu0
        %v2720 = vadd.f32 %v2356, %v2719
        %2721 = vdwg.mxu0
        %2722 = vmatprep.subr.bf16.mxu0 %v2584
        %2723 = vmatpush1.bf16.msra.mxu0 %v2583
        %2724 = vmatprep.subr.bf16.mxu0 %v2586
        %2725 = vmatpush1.bf16.msra.mxu0 %v2585
        %2726 = vmatprep.subr.bf16.mxu0 %v2588
        %2727 = vmatpush1.bf16.msra.mxu0 %v2587
        %2728 = vmatprep.subr.bf16.mxu0 %v2590
        %2729 = vmatpush1.bf16.msra.mxu0 %v2589
        %2730 = vmatprep.subr.bf16.mxu0 %v2592
        %2731 = vmatpush1.bf16.msra.mxu0 %v2591
        %2732 = vmatprep.subr.bf16.mxu0 %v2594
        %2733 = vmatpush1.bf16.msra.mxu0 %v2593
        %2734 = vmatprep.subr.bf16.mxu0 %v2596
        %2735 = vmatpush1.bf16.msra.mxu0 %v2595
        %2736 = vmatprep.subr.bf16.mxu0 %v2598
        %2737 = vmatpush1.bf16.msra.mxu0 %v2597
        %2738 = vmatprep.subr.bf16.mxu0 %v2600
        %2739 = vmatpush1.bf16.msra.mxu0 %v2599
        %2740 = vmatprep.subr.bf16.mxu0 %v2602
        %2741 = vmatpush1.bf16.msra.mxu0 %v2601
        %2742 = vmatprep.subr.bf16.mxu0 %v2604
        %2743 = vmatpush1.bf16.msra.mxu0 %v2603
        %2744 = vmatprep.subr.bf16.mxu0 %v2606
        %2745 = vmatpush1.bf16.msra.mxu0 %v2605
        %2746 = vmatprep.subr.bf16.mxu0 %v2608
        %2747 = vmatpush1.bf16.msra.mxu0 %v2607
        %2748 = vmatprep.subr.bf16.mxu0 %v2610
        %2749 = vmatpush1.bf16.msra.mxu0 %v2609
        %2750 = vmatprep.subr.bf16.mxu0 %v2612
        %2751 = vmatpush1.bf16.msra.mxu0 %v2611
        %2752 = vmatprep.subr.bf16.mxu0 %v2614
        %2753 = vmatpush1.bf16.msra.mxu0 %v2613
        %2754 = vmatprep.mubr.bf16.mxu0 %v2282
        %2755 = vmatmul.mubr.bf16.gmra.mrb[0].mxu0 %v2281
        %v2756 = vpop.f32.mrb[0].mxu0
        %v2757 = vadd.f32 %v2714, %v2756
        %v2758 = vpop.f32.mrb[0].mxu0
        %v2759 = vadd.f32 %v2716, %v2758
        %v2760 = vpop.f32.mrb[0].mxu0
        %v2761 = vadd.f32 %v2718, %v2760
        %v2762 = vpop.f32.mrb[0].mxu0
        %v2763 = vadd.f32 %v2720, %v2762
        %2764 = vdwg.mxu0
        %v2765 = vmax.f32 %v2757, 0.0
        %v2766 = vmax.f32 %v2759, 0.0
        %v2767 = vmax.f32 %v2761, 0.0
        %v2768 = vmax.f32 %v2763, 0.0
        %v2769 = vpack.c.bf16 %v2767, %v2765
        %v2770 = vpack.c.bf16 %v2768, %v2766
        %v2771 = vld [vmem:[#allocation8] sm:$0xf]
        %v2772 = vld [vmem:[#allocation8 + $0x4] sm:$0xf]
        %v2773 = vld [vmem:[#allocation8 + $0x8] sm:$0xf]
        %v2774 = vld [vmem:[#allocation8 + $0xc] sm:$0xf]
        %v2775 = vld [vmem:[#allocation8 + $0x10] sm:$0xf]
        %v2776 = vld [vmem:[#allocation8 + $0x14] sm:$0xf]
        %v2777 = vld [vmem:[#allocation8 + $0x18] sm:$0xf]
        %v2778 = vld [vmem:[#allocation8 + $0x1c] sm:$0xf]
        %v2779 = vld [vmem:[#allocation8 + $0x20] sm:$0xf]
        %v2780 = vld [vmem:[#allocation8 + $0x24] sm:$0xf]
        %v2781 = vld [vmem:[#allocation8 + $0x28] sm:$0xf]
        %v2782 = vld [vmem:[#allocation8 + $0x2c] sm:$0xf]
        %v2783 = vld [vmem:[#allocation8 + $0x30] sm:$0xf]
        %v2784 = vld [vmem:[#allocation8 + $0x34] sm:$0xf]
        %v2785 = vld [vmem:[#allocation8 + $0x38] sm:$0xf]
        %v2786 = vld [vmem:[#allocation8 + $0x3c] sm:$0xf]
        %v2787 = vld [vmem:[#allocation8 + $0x40] sm:$0xf]
        %v2788 = vld [vmem:[#allocation8 + $0x44] sm:$0xf]
        %v2789 = vld [vmem:[#allocation8 + $0x48] sm:$0xf]
        %v2790 = vld [vmem:[#allocation8 + $0x4c] sm:$0xf]
        %v2791 = vld [vmem:[#allocation8 + $0x50] sm:$0xf]
        %v2792 = vld [vmem:[#allocation8 + $0x54] sm:$0xf]
        %v2793 = vld [vmem:[#allocation8 + $0x58] sm:$0xf]
        %v2794 = vld [vmem:[#allocation8 + $0x5c] sm:$0xf]
        %v2795 = vld [vmem:[#allocation8 + $0x60] sm:$0xf]
        %v2796 = vld [vmem:[#allocation8 + $0x64] sm:$0xf]
        %v2797 = vld [vmem:[#allocation8 + $0x68] sm:$0xf]
        %v2798 = vld [vmem:[#allocation8 + $0x6c] sm:$0xf]
        %v2799 = vld [vmem:[#allocation8 + $0x70] sm:$0xf]
        %v2800 = vld [vmem:[#allocation8 + $0x74] sm:$0xf]
        %v2801 = vld [vmem:[#allocation8 + $0x78] sm:$0xf]
        %v2802 = vld [vmem:[#allocation8 + $0x7c] sm:$0xf]
        %v2803 = vld [vmem:[%s6] sm:$0x1]
        %v2805 = vlaneseq
        %v2806 = vshrl.u32 %v2805, 7
        %v2807 = vsub.s32 0, %v2806
        %v2808 = vrot.slane %v2803, %v2807
        %v2842 = vunpack.c.l.b16 %v2771
        %v2843 = vunpack.c.l.b16 %v2772
        %v2844 = vunpack.c.l.b16 %v2773
        %v2845 = vunpack.c.l.b16 %v2774
        %v2846 = vunpack.c.l.b16 %v2775
        %v2847 = vunpack.c.l.b16 %v2776
        %v2848 = vunpack.c.l.b16 %v2777
        %v2849 = vunpack.c.l.b16 %v2778
        %v2850 = vunpack.c.l.b16 %v2779
        %v2851 = vunpack.c.l.b16 %v2780
        %v2852 = vunpack.c.l.b16 %v2781
        %v2853 = vunpack.c.l.b16 %v2782
        %v2854 = vunpack.c.l.b16 %v2783
        %v2855 = vunpack.c.l.b16 %v2784
        %v2856 = vunpack.c.l.b16 %v2785
        %v2857 = vunpack.c.l.b16 %v2786
        %v2858 = vunpack.c.l.b16 %v2787
        %v2859 = vunpack.c.l.b16 %v2788
        %v2860 = vunpack.c.l.b16 %v2789
        %v2861 = vunpack.c.l.b16 %v2790
        %v2862 = vunpack.c.l.b16 %v2791
        %v2863 = vunpack.c.l.b16 %v2792
        %v2864 = vunpack.c.l.b16 %v2793
        %v2865 = vunpack.c.l.b16 %v2794
        %v2866 = vunpack.c.l.b16 %v2795
        %v2867 = vunpack.c.l.b16 %v2796
        %v2868 = vunpack.c.l.b16 %v2797
        %v2869 = vunpack.c.l.b16 %v2798
        %v2870 = vunpack.c.l.b16 %v2799
        %v2871 = vunpack.c.l.b16 %v2800
        %v2872 = vunpack.c.l.b16 %v2801
        %v2873 = vunpack.c.l.b16 %v2802
        %v2874 = vpack.c.b16 %v2843, %v2842
        %v2875 = vpack.c.b16 %v2845, %v2844
        %v2876 = vpack.c.b16 %v2847, %v2846
        %v2877 = vpack.c.b16 %v2849, %v2848
        %v2878 = vpack.c.b16 %v2851, %v2850
        %v2879 = vpack.c.b16 %v2853, %v2852
        %v2880 = vpack.c.b16 %v2855, %v2854
        %v2881 = vpack.c.b16 %v2857, %v2856
        %v2882 = vpack.c.b16 %v2859, %v2858
        %v2883 = vpack.c.b16 %v2861, %v2860
        %v2884 = vpack.c.b16 %v2863, %v2862
        %v2885 = vpack.c.b16 %v2865, %v2864
        %v2886 = vpack.c.b16 %v2867, %v2866
        %v2887 = vpack.c.b16 %v2869, %v2868
        %v2888 = vpack.c.b16 %v2871, %v2870
        %v2889 = vpack.c.b16 %v2873, %v2872
        %2906 = vmatprep.subr.bf16.mxu0 0
        %2907 = vmatpush1.bf16.msra.mxu0 %v2874
        %2908 = vmatprep.subr.bf16.mxu0 0
        %2909 = vmatpush1.bf16.msra.mxu0 %v2875
        %2910 = vmatprep.subr.bf16.mxu0 0
        %2911 = vmatpush1.bf16.msra.mxu0 %v2876
        %2912 = vmatprep.subr.bf16.mxu0 0
        %2913 = vmatpush1.bf16.msra.mxu0 %v2877
        %2914 = vmatprep.subr.bf16.mxu0 0
        %2915 = vmatpush1.bf16.msra.mxu0 %v2878
        %2916 = vmatprep.subr.bf16.mxu0 0
        %2917 = vmatpush1.bf16.msra.mxu0 %v2879
        %2918 = vmatprep.subr.bf16.mxu0 0
        %2919 = vmatpush1.bf16.msra.mxu0 %v2880
        %2920 = vmatprep.subr.bf16.mxu0 0
        %2921 = vmatpush1.bf16.msra.mxu0 %v2881
        %2922 = vmatprep.subr.bf16.mxu0 0
        %2923 = vmatpush1.bf16.msra.mxu0 %v2882
        %2924 = vmatprep.subr.bf16.mxu0 0
        %2925 = vmatpush1.bf16.msra.mxu0 %v2883
        %2926 = vmatprep.subr.bf16.mxu0 0
        %2927 = vmatpush1.bf16.msra.mxu0 %v2884
        %2928 = vmatprep.subr.bf16.mxu0 0
        %2929 = vmatpush1.bf16.msra.mxu0 %v2885
        %2930 = vmatprep.subr.bf16.mxu0 0
        %2931 = vmatpush1.bf16.msra.mxu0 %v2886
        %2932 = vmatprep.subr.bf16.mxu0 0
        %2933 = vmatpush1.bf16.msra.mxu0 %v2887
        %2934 = vmatprep.subr.bf16.mxu0 0
        %2935 = vmatpush1.bf16.msra.mxu0 %v2888
        %2936 = vmatprep.subr.bf16.mxu0 0
        %2937 = vmatpush1.bf16.msra.mxu0 %v2889
        %2938 = vmatprep.mubr.bf16.mxu0 %v2770
        %2939 = vmatmul.mubr.bf16.gmra.mrb[0].mxu0 %v2769
        %v2940 = vpop.f32.mrb[0].mxu0
        %v2941 = vadd.f32 %v2808, %v2940
        %v2942 = vpop.f32.mrb[0].mxu0
        %v2943 = vpop.f32.mrb[0].mxu0
        %v2944 = vadd.f32 %v2808, %v2943
        %v2945 = vpop.f32.mrb[0].mxu0
        %2946 = vdwg.mxu0
        %v2947 = vpack.c.bf16 %v2944, %v2941
        %v2949 = vunpack.c.l.b16 %v2947
        %v2950 = vunpack.c.h.b16 %v2947
        %v2951 = vpack.c.b16 %v2949, %v2949
        %v2952 = vpack.c.b16 %v2950, %v2950
        %2955 = vst [vmem:[%s341] sm:$0xf] %v2951
        %2956 = vst [vmem:[%s341 + $0x4] sm:$0xf] %v2952
        %s2957 = sand.u32 %s186, 1
        %s2958 = scalar_lea.sflag [#allocation4], %s2957
        %s2959 = sand.u32 %s186, 1
        %s2960 = smul.addr %s2959, 8
        %s2961 = scalar_lea.vmem [#allocation10], %s2960
        // Predicated region
        $region65: #{tpu_custom_call.1} parent=47 // pred_check
          %p2962 = pneg %p196
        $region66: #{tpu_custom_call.1} parent=47 // pred_check_branch
          %2964 = sbr.rel (%p2962) target = $region68
        $region67: #{tpu_custom_call.1} parent=47 // pred_region
          %s2965 = smul.u32 2, %s26
          %s2967 = ssub.s32 128, 128
          %2968 = vsyncadd %s2958, %s2967
          %s2969 = smul.addr %s2965, 64
          %s2970 = scalar_lea.hbm %s7, %s2969
          %s2971 = sshll.u32 %s2961, 4
          %s2972 = int_to_ptr.vmem [resolvable:$true] %s2971
          %2977 = dma.vmem_to_hbm [thread:$0]  %s2972, 128, %s2970, %s2958, 64, 64, 4
        $region68: #{tpu_custom_call.1} parent=47 // pred_fallthru
          _
      $region48: #{tpu_custom_call.1} parent=5 // pred_fallthru
        _
      %p2978 = scmp.le.s32.totalorder 2, %s21
      // Predicated region
      $region69: #{tpu_custom_call.1} parent=5 // pred_check
        %p2979 = pneg %p2978
      $region70: #{tpu_custom_call.1} parent=5 // pred_check_branch
        %2981 = sbr.rel (%p2979) target = $region72
      $region71: #{tpu_custom_call.1} parent=5 // pred_region
        %s2982 = ssub.s32 %s21, 2
        // Predicated region
        $region73: #{tpu_custom_call.1} parent=71 // pred_check
          %p2983 = pneg %p202
        $region74: #{tpu_custom_call.1} parent=71 // pred_check_branch
          %2985 = sbr.rel (%p2983) target = $region76
        $region75: #{tpu_custom_call.1} parent=71 // pred_region
          %s2986 = sand.u32 %s187, 1
          %s2987 = scalar_lea.sflag [#allocation4], %s2986
          %s2988 = sand.u32 %s187, 1
          %s2989 = smul.addr %s2988, 8
          %s2990 = scalar_lea.vmem [#allocation10], %s2989
          %2991 = dma.done %s2987, 128
        $region76: #{tpu_custom_call.1} parent=71 // pred_fallthru
          _
      $region72: #{tpu_custom_call.1} parent=5 // pred_fallthru
        _
    $region6: #{tpu_custom_call.1} parent=1 // loop_footer
      %s25 = sadd.s32 1, %s21
    $region7: #{tpu_custom_call.1} parent=1 // loop_footer_branch
      %20 = sbr.rel target = $region3
    $region8: #{tpu_custom_call.1} parent=1 // loop_exit
      _
    %2992 = vsyncpa [#allocation3], 1
    %s2993 = scalar_lea.sflag [#allocation3], 1
    %2994 = vsyncpa %s2993, 1
    %2995 = vsyncpa [#allocation6], 1
    %2996 = vsyncpa [#allocation9], 1
    %2997 = vsyncpa [#allocation4], 1
    %s2998 = scalar_lea.sflag [#allocation4], 1
    %2999 = vsyncpa %s2998, 1

</llo_original>
